<compile_context>
chip_gen: v7x
topology: tpu7x:2x2x1
jax: 0.10.0
libtpu: 0.0.40
codegen_flags: <defaults>
</compile_context>

<pallas_src>
import functools
import math

import jax
import jax.numpy as jnp
from jax.experimental import pallas as pl
from jax.experimental.pallas import tpu as pltpu


def _round_up(x, m):
    return ((x + m - 1) // m) * m


def _vmem_capacity_bytes():
    try:
        return int(pltpu.get_tpu_info().vmem_capacity_bytes)
    except Exception:
        return 64 * 1024 * 1024  # conservative (v7x per-TensorCore VMEM)


def _make_conv_stats_kernel(*, KH, KW, C, TOH, OW, stride, dilation,
                            OH, n_oh, OC_pad, fold):
    """One grid step = conv for one (image, output-row-tile) slab + BN partials."""
    TM = TOH * OW
    T = KH * KW
    need_mask = (OH % TOH) != 0

    def _ds(start, size):
        return pl.ds(start, size) if stride == 1 else pl.ds(start, size, stride)

    def _tap(slab_ref, kh, kw):
        xs = slab_ref[_ds(kh * dilation, TOH), _ds(kw * dilation, OW), :]
        return xs.reshape(TM, C)

    def _tail(acc, y_ref, psum_ref, psq_ref):
        # TODO(synk): y could be stored bf16 (stats come from the f32 acc) to
        # halve intermediate HBM traffic; kept f32 to preserve accuracy.
        y_ref[...] = acc.astype(y_ref.dtype)

        stats = acc
        if need_mask:
            # Mask output rows that fall in the OH padding so they do not
            # perturb the BN batch statistics (their y values are sliced off).
            oh0 = (pl.program_id(0) % n_oh) * TOH
            valid = jnp.maximum(jnp.minimum(OH - oh0, TOH), 0) * OW
            rows = jax.lax.broadcasted_iota(jnp.int32, (TM, 1), 0)
            stats = jnp.where(rows < valid, acc, 0.0)

        # TODO(synk): single-pass E[y^2]-E[y]^2 in f32 can cancel for very
        # large M / extreme means; switch to two-pass stats if shapes grow.
        psum_ref[...] = jnp.broadcast_to(
            jnp.sum(stats, axis=0, keepdims=True), (8, OC_pad))
        psq_ref[...] = jnp.broadcast_to(
            jnp.sum(stats * stats, axis=0, keepdims=True), (8, OC_pad))

    if fold:
        def kernel(slab_ref, w_ref, y_ref, psum_ref, psq_ref, patches_ref):
            # Fold the taps into the contraction dim: gather all KH*KW taps
            # into a VMEM patch scratch, then issue ONE matmul with K = T*C.
            for kh in range(KH):
                for kw in range(KW):
                    t = kh * KW + kw
                    patches_ref[:, pl.ds(t * C, C)] = _tap(slab_ref, kh, kw)
            acc = jnp.dot(patches_ref[...], w_ref[...],
                          preferred_element_type=jnp.float32)
            _tail(acc, y_ref, psum_ref, psq_ref)
    else:
        def kernel(slab_ref, w_ref, y_ref, psum_ref, psq_ref):
            acc = jnp.zeros((TM, OC_pad), jnp.float32)
            for kh in range(KH):
                for kw in range(KW):
                    t = kh * KW + kw
                    acc = acc + jnp.dot(_tap(slab_ref, kh, kw),
                                        w_ref[pl.ds(t * C, C), :],
                                        preferred_element_type=jnp.float32)
            _tail(acc, y_ref, psum_ref, psq_ref)

    return kernel


def _make_bn_relu_nchw_kernel(OC):
    def kernel(y_ref, scale_ref, shift_ref, o_ref):
        y = y_ref[...].astype(jnp.float32)
        z = jnp.maximum(y * scale_ref[...] + shift_ref[...], 0.0)
        # The transpose rides the XLU (free slot in this mem-bound kernel) and
        # yields NCHW output directly -> no trailing XLA transpose of the output.
        o_ref[...] = jnp.transpose(z)[:OC, :]
    return kernel


@functools.partial(jax.jit, static_argnames=("stride", "padding", "dilation",
                                              "eps", "compute_dtype"))
def conv_bn_relu_forward(x, w, gamma, beta, *, stride=1, padding=1, dilation=1,
                         eps=1e-5, compute_dtype=jnp.bfloat16):
    """x: (N, C, H, W) f32; w: (OC, C, KH, KW); gamma/beta: (OC,). Returns NCHW f32."""
    N, C, H, W = x.shape
    OC, _, KH, KW = w.shape
    OH = (H + 2 * padding - dilation * (KH - 1) - 1) // stride + 1
    OW = (W + 2 * padding - dilation * (KW - 1) - 1) // stride + 1
    M = N * OH * OW
    T = KH * KW

    OC_pad = _round_up(OC, 128)               # lane-dense stores / MXU N occupancy
    dtb = jnp.dtype(compute_dtype).itemsize
    fold = C < 128                            # fold taps into the MXU contraction

    cap = _vmem_capacity_bytes()
    budget = max(16 * 1024 * 1024, int(0.4 * cap))   # generation-aware working set

    # Padded-activation extents (left/top pad = `padding`; extra right/bottom
    # zero rows only as needed by the slabs / OH padding).
    right = max(0, (OW - 1) * stride + (KW - 1) * dilation + 1 - W - padding)
    Wp_total = W + padding + right

    # ---- output-row tile TOH (TM = TOH*OW rows per grid step) ----
    mult = 8 // math.gcd(OW, 8)               # keep TM a multiple of the sublane tile

    def k1_vmem(toh):
        tm = toh * OW
        sh = (toh - 1) * stride + (KH - 1) * dilation + 1
        return (2 * sh * Wp_total * C * dtb          # activation slab, dbl-buffered
                + 2 * T * C * OC_pad * dtb           # resident weights
                + 2 * tm * OC_pad * 4                # y tile, dbl-buffered
                + (tm * T * C * dtb if fold else 0)  # folded-patch scratch
                + tm * OC_pad * 4                    # f32 accumulator
                + 4 * 8 * OC_pad * 4)                # partial stats

    TOH = _round_up(min(OH, max(1, 512 // OW)), mult)
    while TOH > mult and k1_vmem(TOH) > budget:
        TOH = max(mult, _round_up(TOH // 2, mult))
    n_oh = (OH + TOH - 1) // TOH
    if n_oh > 1 and (TOH * OW) % 128 != 0:
        # keep the direct-NCHW epilogue block lane-legal (multiple of 128 or full)
        # TODO(synk): for huge images with awkward OW this forces one row-tile.
        TOH = _round_up(OH, mult)
        n_oh = 1
    OH_pad = n_oh * TOH
    TM = TOH * OW
    slab_h = (TOH - 1) * stride + (KH - 1) * dilation + 1
    n_slabs = N * n_oh
    M_pad = n_slabs * TM

    # ---- activations: pad once, slice overlapping row-slabs (halo rows only) ----
    x_nhwc = jnp.transpose(x, (0, 2, 3, 1)).astype(compute_dtype)
    Hp_needed = (OH_pad - 1) * stride + (KH - 1) * dilation + 1
    bot = max(0, Hp_needed - H - padding)
    x_p = jnp.pad(x_nhwc, ((0, 0), (padding, bot), (padding, right), (0, 0)))
    if n_oh == 1:
        slabs = x_p[:, :slab_h]                                    # no copy-expansion
    else:
        row_idx = (jnp.arange(n_oh)[:, None] * (TOH * stride)
                   + jnp.arange(slab_h)[None, :])                  # (n_oh, slab_h)
        slabs = x_p[:, row_idx].reshape(n_slabs, slab_h, Wp_total, C)
    slabs = slabs.reshape(n_slabs, slab_h, Wp_total, C)

    # ---- weights: (OC,C,KH,KW) -> (KH*KW*C, OC_pad), tap-major / C-minor ----
    w_f = jnp.transpose(w, (2, 3, 1, 0)).reshape(T * C, OC)
    w_f = jnp.pad(w_f, ((0, 0), (0, OC_pad - OC))).astype(compute_dtype)

    # ---- kernel 1: conv (tap-folded matmul) + per-tile BN partial stats ----
    conv_kernel = _make_conv_stats_kernel(
        KH=KH, KW=KW, C=C, TOH=TOH, OW=OW, stride=stride, dilation=dilation,
        OH=OH, n_oh=n_oh, OC_pad=OC_pad, fold=fold)

    est1 = k1_vmem(TOH)
    limit1 = int(min(0.8 * cap, max(2 * est1, 16 * 1024 * 1024)))
    bytes1 = (slabs.size * dtb + w_f.size * dtb
              + M_pad * OC_pad * 4 + 2 * n_slabs * 8 * OC_pad * 4)

    y, psum, psq = pl.pallas_call(
        conv_kernel,
        out_shape=(
            jax.ShapeDtypeStruct((M_pad, OC_pad), jnp.float32),
            jax.ShapeDtypeStruct((n_slabs, 8, OC_pad), jnp.float32),
            jax.ShapeDtypeStruct((n_slabs, 8, OC_pad), jnp.float32),
        ),
        grid=(n_slabs,),
        in_specs=[
            pl.BlockSpec((None, slab_h, Wp_total, C), lambda i: (i, 0, 0, 0)),
            pl.BlockSpec((T * C, OC_pad), lambda i: (0, 0)),   # resident: DMA'd once
        ],
        out_specs=(
            pl.BlockSpec((TM, OC_pad), lambda i: (i, 0)),
            pl.BlockSpec((None, 8, OC_pad), lambda i: (i, 0, 0)),
            pl.BlockSpec((None, 8, OC_pad), lambda i: (i, 0, 0)),
        ),
        scratch_shapes=([pltpu.VMEM((TM, T * C), compute_dtype)] if fold else []),
        compiler_params=pltpu.CompilerParams(
            dimension_semantics=("parallel",),
            vmem_limit_bytes=limit1),
        cost_estimate=pl.CostEstimate(
            flops=2 * M_pad * T * C * OC_pad,
            transcendentals=0,
            bytes_accessed=bytes1),
    )(slabs, w_f)

    # ---- fold partial stats (biased variance, training-mode BN) ----
    ysum = jnp.sum(psum[:, 0, :], axis=0)
    ysq = jnp.sum(psq[:, 0, :], axis=0)
    inv_m = 1.0 / M
    mean = ysum * inv_m
    var = ysq * inv_m - mean * mean
    gamma_p = jnp.pad(gamma.astype(jnp.float32), (0, OC_pad - OC))
    beta_p = jnp.pad(beta.astype(jnp.float32), (0, OC_pad - OC))
    s = gamma_p * jax.lax.rsqrt(var + eps)
    scale = s.reshape(1, OC_pad)
    shift = (beta_p - mean * s).reshape(1, OC_pad)

    # ---- kernel 2: fused BN affine + ReLU + NHWC->NCHW permutation ----
    bn_kernel = _make_bn_relu_nchw_kernel(OC)
    est2 = 4 * TM * OC_pad * 4 + 2 * OC * TM * 4 + 4 * OC_pad * 4
    limit2 = int(min(0.8 * cap, max(2 * est2, 16 * 1024 * 1024)))
    bytes2 = M_pad * OC_pad * 4 + N * OC * OH_pad * OW * 4 + 2 * OC_pad * 4

    out_nc = pl.pallas_call(
        bn_kernel,
        out_shape=jax.ShapeDtypeStruct((N, OC, OH_pad * OW), jnp.float32),
        grid=(N, n_oh),
        in_specs=[
            pl.BlockSpec((TM, OC_pad), lambda n, t: (n * n_oh + t, 0)),
            pl.BlockSpec((1, OC_pad), lambda n, t: (0, 0)),
            pl.BlockSpec((1, OC_pad), lambda n, t: (0, 0)),
        ],
        out_specs=pl.BlockSpec((None, OC, TM), lambda n, t: (n, 0, t)),
        compiler_params=pltpu.CompilerParams(
            dimension_semantics=("parallel", "parallel"),
            vmem_limit_bytes=limit2),
        cost_estimate=pl.CostEstimate(
            flops=3 * M_pad * OC_pad,
            transcendentals=0,
            bytes_accessed=bytes2),
    )(y, scale, shift)

    out = out_nc.reshape(N, OC, OH_pad, OW)
    if OH_pad != OH:
        out = out[:, :, :OH, :]
    return out


def _reference(x, w, gamma, beta, *, stride, padding, dilation, eps=1e-5):
    """Pure-JAX reference (lax conv + training-mode BN + ReLU)."""
    y = jax.lax.conv_general_dilated(
        x, w, window_strides=(stride, stride),
        padding=[(padding, padding), (padding, padding)],
        rhs_dilation=(dilation, dilation),
        dimension_numbers=("NCHW", "OIHW", "NCHW"))
    mean = jnp.mean(y, axis=(0, 2, 3), keepdims=True)
    var = jnp.mean((y - mean) ** 2, axis=(0, 2, 3), keepdims=True)
    yn = (y - mean) / jnp.sqrt(var + eps)
    yn = yn * gamma.reshape(1, -1, 1, 1) + beta.reshape(1, -1, 1, 1)
    return jnp.maximum(yn, 0.0)


if __name__ == "__main__":
    key = jax.random.PRNGKey(0)
    k_x, k_w, k_g, k_b = jax.random.split(key, 4)

    # Small shapes: batch=2, in_channels=4, out_channels=8, spatial=16, 3x3 conv.
    N, C, H, W = 2, 4, 16, 16
    OC, KH, KW = 8, 3, 3
    stride, padding, dilation = 1, 1, 1

    x = jax.random.normal(k_x, (N, C, H, W), dtype=jnp.float32)
    w = jax.random.normal(k_w, (OC, C, KH, KW), dtype=jnp.float32) * 0.1
    gamma = jax.random.normal(k_g, (OC,), dtype=jnp.float32) * 0.1 + 1.0
    beta = jax.random.normal(k_b, (OC,), dtype=jnp.float32) * 0.1

    ref = _reference(x, w, gamma, beta,
                     stride=stride, padding=padding, dilation=dilation)

    # f32 operand path: validates the kernel math tightly.
    out_f32 = jax.block_until_ready(conv_bn_relu_forward(
        x, w, gamma, beta, stride=stride, padding=padding, dilation=dilation,
        compute_dtype=jnp.float32))
    assert out_f32.shape == ref.shape == (N, OC, H, W)
    err32 = float(jnp.max(jnp.abs(out_f32 - ref)))
    assert err32 < 2e-3, err32

    # bf16 MXU operand path (the performance configuration).  BN-normalized
    # outputs are O(1), so bf16 operand rounding bounds max-abs error ~1e-2.
    out_bf16 = jax.block_until_ready(conv_bn_relu_forward(
        x, w, gamma, beta, stride=stride, padding=padding, dilation=dilation,
        compute_dtype=jnp.bfloat16))
    assert out_bf16.shape == ref.shape
    err16 = float(jnp.max(jnp.abs(out_bf16 - ref)))
    assert err16 < 5e-2, err16

    print("KERNEL_OK")
</pallas_src>

<mosaic_0001>
module attributes {stable_mosaic.version = 11 : i64} {
  func.func @kernel(%arg0: i32, %arg1: memref<1x18x18x4xf32, #tpu.memory_space<vmem>>, %arg2: memref<36x128xf32, #tpu.memory_space<vmem>>, %arg3: memref<256x128xf32, #tpu.memory_space<vmem>>, %arg4: memref<1x8x128xf32, #tpu.memory_space<vmem>>, %arg5: memref<1x8x128xf32, #tpu.memory_space<vmem>>, %arg6: memref<256x36xf32, #tpu.memory_space<vmem>>) attributes {dimension_semantics = [#tpu.dimension_semantics<parallel>], iteration_bounds = array<i64: 2>, scalar_prefetch = 0 : i64, scratch_operands = 1 : i64, tpu.core_type = #tpu.core_type<tc>, window_params = [{transform_indices = @transform_0, window_bounds = array<i64: 1, 18, 18, 4>}, {pipeline_mode = #tpu.pipeline_mode<synchronous>, transform_indices = @transform_1, window_bounds = array<i64: 36, 128>}, {transform_indices = @transform_2, window_bounds = array<i64: 256, 128>}, {transform_indices = @transform_3, window_bounds = array<i64: 1, 8, 128>}, {transform_indices = @transform_4, window_bounds = array<i64: 1, 8, 128>}]} {
    %c0 = arith.constant 0 : index
    %c0_0 = arith.constant 0 : index
    %c0_1 = arith.constant 0 : index
    %c0_2 = arith.constant 0 : index
    %0 = vector.load %arg1[%c0, %c0_0, %c0_1, %c0_2] : memref<1x18x18x4xf32, #tpu.memory_space<vmem>>, vector<1x16x16x4xf32>
    %1 = vector.shape_cast %0 : vector<1x16x16x4xf32> to vector<16x16x4xf32>
    %2 = vector.shape_cast %1 : vector<16x16x4xf32> to vector<256x4xf32>
    %c0_3 = arith.constant 0 : index
    %c0_4 = arith.constant 0 : index
    %3 = vector.load %arg6[%c0_3, %c0_4] : memref<256x36xf32, #tpu.memory_space<vmem>>, vector<256x4xf32>
    tpu.vector_store %arg6[%c0_3, %c0_4], %2 {strides = array<i32>} : memref<256x36xf32, #tpu.memory_space<vmem>>, vector<256x4xf32>,
    %c0_5 = arith.constant 0 : index
    %c0_6 = arith.constant 0 : index
    %c1 = arith.constant 1 : index
    %c0_7 = arith.constant 0 : index
    %4 = vector.load %arg1[%c0_5, %c0_6, %c1, %c0_7] : memref<1x18x18x4xf32, #tpu.memory_space<vmem>>, vector<1x16x16x4xf32>
    %5 = vector.shape_cast %4 : vector<1x16x16x4xf32> to vector<16x16x4xf32>
    %6 = vector.shape_cast %5 : vector<16x16x4xf32> to vector<256x4xf32>
    %c0_8 = arith.constant 0 : index
    %c4 = arith.constant 4 : index
    %7 = vector.load %arg6[%c0_8, %c4] : memref<256x36xf32, #tpu.memory_space<vmem>>, vector<256x4xf32>
    tpu.vector_store %arg6[%c0_8, %c4], %6 {strides = array<i32>} : memref<256x36xf32, #tpu.memory_space<vmem>>, vector<256x4xf32>,
    %c0_9 = arith.constant 0 : index
    %c0_10 = arith.constant 0 : index
    %c2 = arith.constant 2 : index
    %c0_11 = arith.constant 0 : index
    %8 = vector.load %arg1[%c0_9, %c0_10, %c2, %c0_11] : memref<1x18x18x4xf32, #tpu.memory_space<vmem>>, vector<1x16x16x4xf32>
    %9 = vector.shape_cast %8 : vector<1x16x16x4xf32> to vector<16x16x4xf32>
    %10 = vector.shape_cast %9 : vector<16x16x4xf32> to vector<256x4xf32>
    %c0_12 = arith.constant 0 : index
    %c8 = arith.constant 8 : index
    %11 = vector.load %arg6[%c0_12, %c8] : memref<256x36xf32, #tpu.memory_space<vmem>>, vector<256x4xf32>
    tpu.vector_store %arg6[%c0_12, %c8], %10 {strides = array<i32>} : memref<256x36xf32, #tpu.memory_space<vmem>>, vector<256x4xf32>,
    %c0_13 = arith.constant 0 : index
    %c1_14 = arith.constant 1 : index
    %c0_15 = arith.constant 0 : index
    %c0_16 = arith.constant 0 : index
    %12 = vector.load %arg1[%c0_13, %c1_14, %c0_15, %c0_16] : memref<1x18x18x4xf32, #tpu.memory_space<vmem>>, vector<1x16x16x4xf32>
    %13 = vector.shape_cast %12 : vector<1x16x16x4xf32> to vector<16x16x4xf32>
    %14 = vector.shape_cast %13 : vector<16x16x4xf32> to vector<256x4xf32>
    %c0_17 = arith.constant 0 : index
    %c12 = arith.constant 12 : index
    %15 = vector.load %arg6[%c0_17, %c12] : memref<256x36xf32, #tpu.memory_space<vmem>>, vector<256x4xf32>
    tpu.vector_store %arg6[%c0_17, %c12], %14 {strides = array<i32>} : memref<256x36xf32, #tpu.memory_space<vmem>>, vector<256x4xf32>,
    %c0_18 = arith.constant 0 : index
    %c1_19 = arith.constant 1 : index
    %c1_20 = arith.constant 1 : index
    %c0_21 = arith.constant 0 : index
    %16 = vector.load %arg1[%c0_18, %c1_19, %c1_20, %c0_21] : memref<1x18x18x4xf32, #tpu.memory_space<vmem>>, vector<1x16x16x4xf32>
    %17 = vector.shape_cast %16 : vector<1x16x16x4xf32> to vector<16x16x4xf32>
    %18 = vector.shape_cast %17 : vector<16x16x4xf32> to vector<256x4xf32>
    %c0_22 = arith.constant 0 : index
    %c16 = arith.constant 16 : index
    %19 = vector.load %arg6[%c0_22, %c16] : memref<256x36xf32, #tpu.memory_space<vmem>>, vector<256x4xf32>
    tpu.vector_store %arg6[%c0_22, %c16], %18 {strides = array<i32>} : memref<256x36xf32, #tpu.memory_space<vmem>>, vector<256x4xf32>,
    %c0_23 = arith.constant 0 : index
    %c1_24 = arith.constant 1 : index
    %c2_25 = arith.constant 2 : index
    %c0_26 = arith.constant 0 : index
    %20 = vector.load %arg1[%c0_23, %c1_24, %c2_25, %c0_26] : memref<1x18x18x4xf32, #tpu.memory_space<vmem>>, vector<1x16x16x4xf32>
    %21 = vector.shape_cast %20 : vector<1x16x16x4xf32> to vector<16x16x4xf32>
    %22 = vector.shape_cast %21 : vector<16x16x4xf32> to vector<256x4xf32>
    %c0_27 = arith.constant 0 : index
    %c20 = arith.constant 20 : index
    %23 = vector.load %arg6[%c0_27, %c20] : memref<256x36xf32, #tpu.memory_space<vmem>>, vector<256x4xf32>
    tpu.vector_store %arg6[%c0_27, %c20], %22 {strides = array<i32>} : memref<256x36xf32, #tpu.memory_space<vmem>>, vector<256x4xf32>,
    %c0_28 = arith.constant 0 : index
    %c2_29 = arith.constant 2 : index
    %c0_30 = arith.constant 0 : index
    %c0_31 = arith.constant 0 : index
    %24 = vector.load %arg1[%c0_28, %c2_29, %c0_30, %c0_31] : memref<1x18x18x4xf32, #tpu.memory_space<vmem>>, vector<1x16x16x4xf32>
    %25 = vector.shape_cast %24 : vector<1x16x16x4xf32> to vector<16x16x4xf32>
    %26 = vector.shape_cast %25 : vector<16x16x4xf32> to vector<256x4xf32>
    %c0_32 = arith.constant 0 : index
    %c24 = arith.constant 24 : index
    %27 = vector.load %arg6[%c0_32, %c24] : memref<256x36xf32, #tpu.memory_space<vmem>>, vector<256x4xf32>
    tpu.vector_store %arg6[%c0_32, %c24], %26 {strides = array<i32>} : memref<256x36xf32, #tpu.memory_space<vmem>>, vector<256x4xf32>,
    %c0_33 = arith.constant 0 : index
    %c2_34 = arith.constant 2 : index
    %c1_35 = arith.constant 1 : index
    %c0_36 = arith.constant 0 : index
    %28 = vector.load %arg1[%c0_33, %c2_34, %c1_35, %c0_36] : memref<1x18x18x4xf32, #tpu.memory_space<vmem>>, vector<1x16x16x4xf32>
    %29 = vector.shape_cast %28 : vector<1x16x16x4xf32> to vector<16x16x4xf32>
    %30 = vector.shape_cast %29 : vector<16x16x4xf32> to vector<256x4xf32>
    %c0_37 = arith.constant 0 : index
    %c28 = arith.constant 28 : index
    %31 = vector.load %arg6[%c0_37, %c28] : memref<256x36xf32, #tpu.memory_space<vmem>>, vector<256x4xf32>
    tpu.vector_store %arg6[%c0_37, %c28], %30 {strides = array<i32>} : memref<256x36xf32, #tpu.memory_space<vmem>>, vector<256x4xf32>,
    %c0_38 = arith.constant 0 : index
    %c2_39 = arith.constant 2 : index
    %c2_40 = arith.constant 2 : index
    %c0_41 = arith.constant 0 : index
    %32 = vector.load %arg1[%c0_38, %c2_39, %c2_40, %c0_41] : memref<1x18x18x4xf32, #tpu.memory_space<vmem>>, vector<1x16x16x4xf32>
    %33 = vector.shape_cast %32 : vector<1x16x16x4xf32> to vector<16x16x4xf32>
    %34 = vector.shape_cast %33 : vector<16x16x4xf32> to vector<256x4xf32>
    %c0_42 = arith.constant 0 : index
    %c32 = arith.constant 32 : index
    %35 = vector.load %arg6[%c0_42, %c32] : memref<256x36xf32, #tpu.memory_space<vmem>>, vector<256x4xf32>
    tpu.vector_store %arg6[%c0_42, %c32], %34 {strides = array<i32>} : memref<256x36xf32, #tpu.memory_space<vmem>>, vector<256x4xf32>,
    %c0_43 = arith.constant 0 : index
    %c0_44 = arith.constant 0 : index
    %36 = vector.load %arg6[%c0_43, %c0_44] : memref<256x36xf32, #tpu.memory_space<vmem>>, vector<256x36xf32>
    %c0_45 = arith.constant 0 : index
    %c0_46 = arith.constant 0 : index
    %37 = vector.load %arg2[%c0_45, %c0_46] : memref<36x128xf32, #tpu.memory_space<vmem>>, vector<36x128xf32>
    %cst = arith.constant dense<0.000000e+00> : vector<256x128xf32>
    %38 = tpu.matmul %36, %37, %cst {dimension_numbers = #tpu.dot_dimension_numbers<[1], [0], [0], [1], [0, 0, 1, 1], [], []>} : vector<256x36xf32>, vector<36x128xf32>, vector<256x128xf32> -> vector<256x128xf32>
    %c0_47 = arith.constant 0 : index
    %c0_48 = arith.constant 0 : index
    %39 = vector.load %arg3[%c0_47, %c0_48] : memref<256x128xf32, #tpu.memory_space<vmem>>, vector<256x128xf32>
    tpu.vector_store %arg3[%c0_47, %c0_48], %38 {strides = array<i32>} : memref<256x128xf32, #tpu.memory_space<vmem>>, vector<256x128xf32>,
    %cst_49 = arith.constant dense<0.000000e+00> : vector<128xf32>
    %40 = vector.multi_reduction <add>, %38, %cst_49 [0] : vector<256x128xf32> to vector<128xf32>
    %41 = vector.shape_cast %40 : vector<128xf32> to vector<1x128xf32>
    %42 = vector.shape_cast %41 : vector<1x128xf32> to vector<1x128xf32>
    %43 = vector.broadcast %42 : vector<1x128xf32> to vector<8x128xf32>
    %c0_50 = arith.constant 0 : index
    %c0_51 = arith.constant 0 : index
    %c0_52 = arith.constant 0 : index
    %44 = vector.load %arg4[%c0_50, %c0_51, %c0_52] : memref<1x8x128xf32, #tpu.memory_space<vmem>>, vector<1x8x128xf32>
    %45 = vector.shape_cast %44 : vector<1x8x128xf32> to vector<8x128xf32>
    %46 = vector.shape_cast %43 : vector<8x128xf32> to vector<1x8x128xf32>
    tpu.vector_store %arg4[%c0_50, %c0_51, %c0_52], %46 {strides = array<i32>} : memref<1x8x128xf32, #tpu.memory_space<vmem>>, vector<1x8x128xf32>,
    %47 = arith.mulf %38, %38 : vector<256x128xf32>
    %cst_53 = arith.constant dense<0.000000e+00> : vector<128xf32>
    %48 = vector.multi_reduction <add>, %47, %cst_53 [0] : vector<256x128xf32> to vector<128xf32>
    %49 = vector.shape_cast %48 : vector<128xf32> to vector<1x128xf32>
    %50 = vector.shape_cast %49 : vector<1x128xf32> to vector<1x128xf32>
    %51 = vector.broadcast %50 : vector<1x128xf32> to vector<8x128xf32>
    %c0_54 = arith.constant 0 : index
    %c0_55 = arith.constant 0 : index
    %c0_56 = arith.constant 0 : index
    %52 = vector.load %arg5[%c0_54, %c0_55, %c0_56] : memref<1x8x128xf32, #tpu.memory_space<vmem>>, vector<1x8x128xf32>
    %53 = vector.shape_cast %52 : vector<1x8x128xf32> to vector<8x128xf32>
    %54 = vector.shape_cast %51 : vector<8x128xf32> to vector<1x8x128xf32>
    tpu.vector_store %arg5[%c0_54, %c0_55, %c0_56], %54 {strides = array<i32>} : memref<1x8x128xf32, #tpu.memory_space<vmem>>, vector<1x8x128xf32>,
    return
  }
  func.func @transform_0(%arg0: i32) -> (i32, i32, i32, i32) {
    %c0_i32 = arith.constant 0 : i32
    %c0_i32_0 = arith.constant 0 : i32
    %c0_i32_1 = arith.constant 0 : i32
    %c0_i32_2 = arith.constant 0 : i32
    return %arg0, %c0_i32, %c0_i32_0, %c0_i32_1 : i32, i32, i32, i32
  }
  func.func @transform_1(%arg0: i32) -> (i32, i32) {
    %c0_i32 = arith.constant 0 : i32
    %c0_i32_0 = arith.constant 0 : i32
    %c0_i32_1 = arith.constant 0 : i32
    return %c0_i32, %c0_i32_0 : i32, i32
  }
  func.func @transform_2(%arg0: i32) -> (i32, i32) {
    %c0_i32 = arith.constant 0 : i32
    %c0_i32_0 = arith.constant 0 : i32
    return %arg0, %c0_i32 : i32, i32
  }
  func.func @transform_3(%arg0: i32) -> (i32, i32, i32) {
    %c0_i32 = arith.constant 0 : i32
    %c0_i32_0 = arith.constant 0 : i32
    %c0_i32_1 = arith.constant 0 : i32
    return %arg0, %c0_i32, %c0_i32_0 : i32, i32, i32
  }
  func.func @transform_4(%arg0: i32) -> (i32, i32, i32) {
    %c0_i32 = arith.constant 0 : i32
    %c0_i32_0 = arith.constant 0 : i32
    %c0_i32_1 = arith.constant 0 : i32
    return %arg0, %c0_i32, %c0_i32_0 : i32, i32, i32
  }
}

module attributes {stable_mosaic.version = 11 : i64} {
  func.func @kernel(%arg0: i32, %arg1: i32, %arg2: memref<256x128xf32, #tpu.memory_space<vmem>>, %arg3: memref<1x128xf32, #tpu.memory_space<vmem>>, %arg4: memref<1x128xf32, #tpu.memory_space<vmem>>, %arg5: memref<1x8x256xf32, #tpu.memory_space<vmem>>) attributes {dimension_semantics = [#tpu.dimension_semantics<parallel>, #tpu.dimension_semantics<parallel>], iteration_bounds = array<i64: 2, 1>, scalar_prefetch = 0 : i64, scratch_operands = 0 : i64, tpu.core_type = #tpu.core_type<tc>, window_params = [{transform_indices = @transform_0, window_bounds = array<i64: 256, 128>}, {pipeline_mode = #tpu.pipeline_mode<synchronous>, transform_indices = @transform_1, window_bounds = array<i64: 1, 128>}, {pipeline_mode = #tpu.pipeline_mode<synchronous>, transform_indices = @transform_2, window_bounds = array<i64: 1, 128>}, {transform_indices = @transform_3, window_bounds = array<i64: 1, 8, 256>}]} {
    %c0 = arith.constant 0 : index
    %c0_0 = arith.constant 0 : index
    %0 = vector.load %arg2[%c0, %c0_0] : memref<256x128xf32, #tpu.memory_space<vmem>>, vector<256x128xf32>
    %c0_1 = arith.constant 0 : index
    %c0_2 = arith.constant 0 : index
    %1 = vector.load %arg3[%c0_1, %c0_2] : memref<1x128xf32, #tpu.memory_space<vmem>>, vector<1x128xf32>
    %2 = vector.broadcast %1 : vector<1x128xf32> to vector<256x128xf32>
    %3 = arith.mulf %0, %2 : vector<256x128xf32>
    %c0_3 = arith.constant 0 : index
    %c0_4 = arith.constant 0 : index
    %4 = vector.load %arg4[%c0_3, %c0_4] : memref<1x128xf32, #tpu.memory_space<vmem>>, vector<1x128xf32>
    %5 = vector.broadcast %4 : vector<1x128xf32> to vector<256x128xf32>
    %6 = arith.addf %3, %5 : vector<256x128xf32>
    %cst = arith.constant 0.000000e+00 : f32
    %7 = vector.broadcast %cst : f32 to vector<256x128xf32>
    %8 = arith.maximumf %6, %7 : vector<256x128xf32>
    %9 = tpu.transpose %8, [1, 0] : vector<256x128xf32> -> vector<128x256xf32>
    %10 = vector.extract_strided_slice %9 {offsets = [0, 0], sizes = [8, 256], strides = [1, 1]} : vector<128x256xf32> to vector<8x256xf32>
    %c0_5 = arith.constant 0 : index
    %c0_6 = arith.constant 0 : index
    %c0_7 = arith.constant 0 : index
    %11 = vector.load %arg5[%c0_5, %c0_6, %c0_7] : memref<1x8x256xf32, #tpu.memory_space<vmem>>, vector<1x8x256xf32>
    %12 = vector.shape_cast %11 : vector<1x8x256xf32> to vector<8x256xf32>
    %13 = vector.shape_cast %10 : vector<8x256xf32> to vector<1x8x256xf32>
    tpu.vector_store %arg5[%c0_5, %c0_6, %c0_7], %13 {strides = array<i32>} : memref<1x8x256xf32, #tpu.memory_space<vmem>>, vector<1x8x256xf32>,
    return
  }
  func.func @transform_0(%arg0: i32, %arg1: i32) -> (i32, i32) {
    %c1_i32 = arith.constant 1 : i32
    %0 = arith.muli %arg0, %c1_i32 : i32
    %1 = arith.addi %0, %arg1 : i32
    %c0_i32 = arith.constant 0 : i32
    %c0_i32_0 = arith.constant 0 : i32
    return %1, %c0_i32 : i32, i32
  }
  func.func @transform_1(%arg0: i32, %arg1: i32) -> (i32, i32) {
    %c0_i32 = arith.constant 0 : i32
    %c0_i32_0 = arith.constant 0 : i32
    %c0_i32_1 = arith.constant 0 : i32
    return %c0_i32, %c0_i32_0 : i32, i32
  }
  func.func @transform_2(%arg0: i32, %arg1: i32) -> (i32, i32) {
    %c0_i32 = arith.constant 0 : i32
    %c0_i32_0 = arith.constant 0 : i32
    %c0_i32_1 = arith.constant 0 : i32
    return %c0_i32, %c0_i32_0 : i32, i32
  }
  func.func @transform_3(%arg0: i32, %arg1: i32) -> (i32, i32, i32) {
    %c0_i32 = arith.constant 0 : i32
    %c0_i32_0 = arith.constant 0 : i32
    return %arg0, %c0_i32, %arg1 : i32, i32, i32
  }
}

</mosaic_0001>

<llo_original>
// kernel: conv_bn_relu_forward.3
$region0: #{conv_bn_relu_forward.3}
  #allocation0 [shape = 'u32[]', space=smem, size = 0x4, offset = 0x4, fixed_abs, tag = 'smem constant byte address 0x4 - core index']
  #allocation1 [shape = 'u32[144,128]{1,0:T(1,128)}', space=vmem, size = 0x12000, scoped, tag = 'internal scratch']
  %s0 = inlined_call_operand.vmem [shape: f32[512,128], index: 0, kind: input, shape index: {}]
  %s1 = inlined_call_operand.vmem [shape: f32[1,128], index: 1, kind: input, shape index: {}]
  %s2 = inlined_call_operand.vmem [shape: f32[1,128], index: 2, kind: input, shape index: {}]
  %s3 = inlined_call_operand.vmem [shape: f32[2,8,256], index: 3, kind: output, shape index: {}]
  %s4 = sld [smem:[#allocation0]]
  $region45: #{conv_bn_relu_forward.3} parent=0
    _
  %s6 = ssub.s32 1, %s4
  %s7 = scalar_select 0, %s6, %s4
  loop: start=0, step=1, limit=4
  $region2: #{conv_bn_relu_forward.3} parent=0 // loop_pre_header
    _
  $region3: #{conv_bn_relu_forward.3} parent=0 // loop_header
    %s9 = sphi 0, %s13
    %p10 = scmp.ge.s32.totalorder %s9, 4
    %s16 = sphi 0, %s28
    %s17 = sphi 0, %s24
    %s18 = sphi 0, %s16
    %s19 = sphi 0, %s17
    %s20 = sphi 0, %s18
    %s21 = sphi 0, %s19
    %s33 = sphi 0, %s35
    %s36 = sphi 0, %s33
    %s37 = sphi 0, %s36
    %s53 = sphi 0, %s37
    %s57 = sphi 0, %s57
    %s59 = sphi 0, %s57
    %s60 = sphi 0, %s59
    %s74 = sphi 0, %s60
    %s78 = sphi 0, %s78
    %s80 = sphi 0, %s78
    %s81 = sphi 0, %s80
    %s95 = sphi 0, %s81
    %s103 = sphi 0, %s105
    %s106 = sphi 0, %s103
    %s107 = sphi 0, %s106
    %s123 = sphi 0, %s107
  $region4: #{conv_bn_relu_forward.3} parent=0 // loop_header_branch
    %12 = sbr.rel (%p10) target = $region8
  $region5: #{conv_bn_relu_forward.3} parent=0 // loop_body
    %s14 = ssub.s32 %s9, 1
    %s15 = ssub.s32 %s9, 2
    %s22 = sadd.s32 1, %s17
    %p23 = scmp.ge.s32.totalorder %s22, 1
    %s24 = scalar_select %p23, 0, %s22
    %s25 = sadd.s32 1, %s16
    %s26 = scalar_select %p23, %s25, %s16
    %p27 = scmp.ge.s32.totalorder %s26, 2
    %s28 = scalar_select %p27, 0, %s26
    %s29 = sadd.s32 %s16, %s17
    %s30 = sadd.s32 %s28, %s24
    %s31 = ssub.s32 %s29, %s30
    %p32 = scmp.eq.s32.totalorder %s31, 0
    %s34 = sadd.s32 %s33, 1
    %s35 = scalar_select %p32, %s33, %s34
    %p38 = pneg %p32
    %p39 = scmp.eq.s32.totalorder %s9, 1
    %p40 = por %p38, %p39
    %p41 = scmp.ne.s32.totalorder %s33, %s36
    %p42 = scmp.eq.s32.totalorder %s9, 0
    %p43 = por %p41, %p42
    %p44 = scmp.ne.s32.totalorder %s33, %s36
    %p45 = scmp.eq.s32.totalorder %s14, 1
    %p46 = por %p44, %p45
    %p47 = scmp.ne.s32.totalorder %s36, %s37
    %p48 = scmp.eq.s32.totalorder %s14, 0
    %p49 = por %p47, %p48
    %p50 = scmp.ne.s32.totalorder %s36, %s37
    %p51 = scmp.eq.s32.totalorder %s15, 1
    %p52 = por %p50, %p51
    %p54 = scmp.ne.s32.totalorder %s37, %s53
    %p55 = scmp.eq.s32.totalorder %s15, 0
    %p56 = por %p54, %p55
    %s58 = sadd.s32 %s57, 1
    %p61 = scmp.eq.s32.totalorder %s9, 1
    %p62 = scmp.ne.s32.totalorder %s57, %s59
    %p63 = scmp.eq.s32.totalorder %s9, 0
    %p64 = por %p62, %p63
    %p65 = scmp.ne.s32.totalorder %s57, %s59
    %p66 = scmp.eq.s32.totalorder %s14, 1
    %p67 = por %p65, %p66
    %p68 = scmp.ne.s32.totalorder %s59, %s60
    %p69 = scmp.eq.s32.totalorder %s14, 0
    %p70 = por %p68, %p69
    %p71 = scmp.ne.s32.totalorder %s59, %s60
    %p72 = scmp.eq.s32.totalorder %s15, 1
    %p73 = por %p71, %p72
    %p75 = scmp.ne.s32.totalorder %s60, %s74
    %p76 = scmp.eq.s32.totalorder %s15, 0
    %p77 = por %p75, %p76
    %s79 = sadd.s32 %s78, 1
    %p82 = scmp.eq.s32.totalorder %s9, 1
    %p83 = scmp.ne.s32.totalorder %s78, %s80
    %p84 = scmp.eq.s32.totalorder %s9, 0
    %p85 = por %p83, %p84
    %p86 = scmp.ne.s32.totalorder %s78, %s80
    %p87 = scmp.eq.s32.totalorder %s14, 1
    %p88 = por %p86, %p87
    %p89 = scmp.ne.s32.totalorder %s80, %s81
    %p90 = scmp.eq.s32.totalorder %s14, 0
    %p91 = por %p89, %p90
    %p92 = scmp.ne.s32.totalorder %s80, %s81
    %p93 = scmp.eq.s32.totalorder %s15, 1
    %p94 = por %p92, %p93
    %p96 = scmp.ne.s32.totalorder %s81, %s95
    %p97 = scmp.eq.s32.totalorder %s15, 0
    %p98 = por %p96, %p97
    %s99 = ssub.s32 %s16, %s28
    %s100 = ssub.s32 %s17, %s24
    %s101 = sor.u32 %s99, %s100
    %p102 = scmp.eq.s32.totalorder %s101, 0
    %s104 = sadd.s32 %s103, 1
    %s105 = scalar_select %p102, %s103, %s104
    %p108 = pneg %p102
    %p109 = scmp.eq.s32.totalorder %s9, 1
    %p110 = por %p108, %p109
    %p111 = scmp.ne.s32.totalorder %s103, %s106
    %p112 = scmp.eq.s32.totalorder %s9, 0
    %p113 = por %p111, %p112
    %p114 = scmp.ne.s32.totalorder %s103, %s106
    %p115 = scmp.eq.s32.totalorder %s14, 1
    %p116 = por %p114, %p115
    %p117 = scmp.ne.s32.totalorder %s106, %s107
    %p118 = scmp.eq.s32.totalorder %s14, 0
    %p119 = por %p117, %p118
    %p120 = scmp.ne.s32.totalorder %s106, %s107
    %p121 = scmp.eq.s32.totalorder %s15, 1
    %p122 = por %p120, %p121
    %p124 = scmp.ne.s32.totalorder %s107, %s123
    %p125 = scmp.eq.s32.totalorder %s15, 0
    %p126 = por %p124, %p125
    %p127 = scmp.le.s32.totalorder 1, %s9
    %p128 = scmp.lt.s32.totalorder %s9, 3
    %p129 = pnand %p127, %p128
    %p130 = pneg %p129
    // Predicated region
    $region9: #{conv_bn_relu_forward.3} parent=5 // pred_check
      _
    $region10: #{conv_bn_relu_forward.3} parent=5 // pred_check_branch
      %132 = sbr.rel (%p129) target = $region12
    $region11: #{conv_bn_relu_forward.3} parent=5 // pred_region
      %s133 = ssub.s32 %s9, 1
      // Predicated region
      $region13: #{conv_bn_relu_forward.3} parent=11 // pred_check
        %p134 = pneg %p70
      $region14: #{conv_bn_relu_forward.3} parent=11 // pred_check_branch
        %136 = sbr.rel (%p134) target = $region16
      $region15: #{conv_bn_relu_forward.3} parent=11 // pred_region
        _
      $region16: #{conv_bn_relu_forward.3} parent=11 // pred_fallthru
        _
      // Predicated region
      $region17: #{conv_bn_relu_forward.3} parent=11 // pred_check
        %p137 = pneg %p91
      $region18: #{conv_bn_relu_forward.3} parent=11 // pred_check_branch
        %139 = sbr.rel (%p137) target = $region20
      $region19: #{conv_bn_relu_forward.3} parent=11 // pred_region
        _
      $region20: #{conv_bn_relu_forward.3} parent=11 // pred_fallthru
        _
    $region12: #{conv_bn_relu_forward.3} parent=5 // pred_fallthru
      _
    %p140 = scmp.lt.s32.totalorder %s9, 2
    // Predicated region
    $region21: #{conv_bn_relu_forward.3} parent=5 // pred_check
      %p141 = pneg %p140
    $region22: #{conv_bn_relu_forward.3} parent=5 // pred_check_branch
      %143 = sbr.rel (%p141) target = $region24
    $region23: #{conv_bn_relu_forward.3} parent=5 // pred_region
      // Predicated region
      $region25: #{conv_bn_relu_forward.3} parent=23 // pred_check
        %p144 = pneg %p43
      $region26: #{conv_bn_relu_forward.3} parent=23 // pred_check_branch
        %146 = sbr.rel (%p144) target = $region28
      $region27: #{conv_bn_relu_forward.3} parent=23 // pred_region
        %s147 = sadd.s32 %s16, %s17
        %s148 = smul.u32 32, %s147
        %p149 = scmp.lt.s32.totalorder %s148, 63
        %s150 = scalar_select %p149, %s148, 63
        %s151 = smul.addr %s150, 8
        %s152 = scalar_lea.vmem %s0, %s151
        %s153 = sadd.s32 %s16, %s17
        %s154 = smul.u32 32, %s153
      $region28: #{conv_bn_relu_forward.3} parent=23 // pred_fallthru
        _
    $region24: #{conv_bn_relu_forward.3} parent=5 // pred_fallthru
      _
    %p155 = scmp.le.s32.totalorder 1, %s9
    %p156 = scmp.lt.s32.totalorder %s9, 3
    %p157 = pnand %p155, %p156
    %p158 = pneg %p157
    // Predicated region
    $region29: #{conv_bn_relu_forward.3} parent=5 // pred_check
      _
    $region30: #{conv_bn_relu_forward.3} parent=5 // pred_check_branch
      %160 = sbr.rel (%p157) target = $region32
    $region31: #{conv_bn_relu_forward.3} parent=5 // pred_region
      %s161 = ssub.s32 %s9, 1
      %s162 = sadd.s32 %s18, %s19
      %s163 = smul.u32 32, %s162
      %p164 = scmp.lt.s32.totalorder %s163, 63
      %s165 = scalar_select %p164, %s163, 63
      %s166 = smul.addr %s165, 8
      %s167 = scalar_lea.vmem %s0, %s166
      %p168 = pneg %p49
      %p169 = pneg %p46
      %p170 = pneg %p70
      %p171 = pneg %p67
      %p172 = pneg %p91
      %p173 = pneg %p88
      %p174 = pneg %p119
      %p175 = pneg %p116
      %s176 = smul.u32 2, %s19
      %p177 = scmp.lt.s32.totalorder %s18, 1
      %s178 = scalar_select %p177, %s18, 1
      %p179 = scmp.lt.s32.totalorder %s176, 1
      %s180 = scalar_select %p179, %s176, 1
      %s181 = smul.addr %s178, 2
      %s182 = sadd.s32 %s180, %s181
      %s183 = smul.addr %s182, 8
      %s184 = scalar_lea.vmem %s3, %s183
      %s185 = sadd.s32 %s18, %s19
      %s186 = smul.u32 32, %s185
      %p187 = scmp.lt.s32.totalorder %s186, 63
      %s188 = scalar_select %p187, %s186, 63
      %s189 = smul.addr %s188, 8
      %s190 = scalar_lea.vmem %s0, %s189
      %s191 = sadd.s32 %s18, %s19
      %s192 = smul.u32 32, %s191
      %s193 = smul.u32 2, %s19
      %p194 = scmp.lt.s32.totalorder %s18, 1
      %s195 = scalar_select %p194, %s18, 1
      %p196 = scmp.lt.s32.totalorder %s193, 1
      %s197 = scalar_select %p196, %s193, 1
      %s198 = smul.addr %s195, 2
      %s199 = sadd.s32 %s197, %s198
      %s200 = smul.addr %s199, 8
      %s201 = scalar_lea.vmem %s3, %s200
      %s202 = smul.u32 2, %s19
      %v203 = vld [vmem:[%s190] sm:$0xff]
      %v204 = vld [vmem:[%s190 + $0x8] sm:$0xff]
      %v205 = vld [vmem:[%s190 + $0x10] sm:$0xff]
      %v206 = vld [vmem:[%s190 + $0x18] sm:$0xff]
      %v207 = vld [vmem:[%s190 + $0x20] sm:$0xff]
      %v208 = vld [vmem:[%s190 + $0x28] sm:$0xff]
      %v209 = vld [vmem:[%s190 + $0x30] sm:$0xff]
      %v210 = vld [vmem:[%s190 + $0x38] sm:$0xff]
      %v211 = vld [vmem:[%s190 + $0x40] sm:$0xff]
      %v212 = vld [vmem:[%s190 + $0x48] sm:$0xff]
      %v213 = vld [vmem:[%s190 + $0x50] sm:$0xff]
      %v214 = vld [vmem:[%s190 + $0x58] sm:$0xff]
      %v215 = vld [vmem:[%s190 + $0x60] sm:$0xff]
      %v216 = vld [vmem:[%s190 + $0x68] sm:$0xff]
      %v217 = vld [vmem:[%s190 + $0x70] sm:$0xff]
      %v218 = vld [vmem:[%s190 + $0x78] sm:$0xff]
      %v219 = vld [vmem:[%s190 + $0x80] sm:$0xff]
      %v220 = vld [vmem:[%s190 + $0x88] sm:$0xff]
      %v221 = vld [vmem:[%s190 + $0x90] sm:$0xff]
      %v222 = vld [vmem:[%s190 + $0x98] sm:$0xff]
      %v223 = vld [vmem:[%s190 + $0xa0] sm:$0xff]
      %v224 = vld [vmem:[%s190 + $0xa8] sm:$0xff]
      %v225 = vld [vmem:[%s190 + $0xb0] sm:$0xff]
      %v226 = vld [vmem:[%s190 + $0xb8] sm:$0xff]
      %v227 = vld [vmem:[%s190 + $0xc0] sm:$0xff]
      %v228 = vld [vmem:[%s190 + $0xc8] sm:$0xff]
      %v229 = vld [vmem:[%s190 + $0xd0] sm:$0xff]
      %v230 = vld [vmem:[%s190 + $0xd8] sm:$0xff]
      %v231 = vld [vmem:[%s190 + $0xe0] sm:$0xff]
      %v232 = vld [vmem:[%s190 + $0xe8] sm:$0xff]
      %v233 = vld [vmem:[%s190 + $0xf0] sm:$0xff]
      %v234 = vld [vmem:[%s190 + $0xf8] sm:$0xff]
      %v235 = vld [vmem:[%s1] sm:$0x1]
      %v237 = vlaneseq
      %v238 = vshrl.u32 %v237, 7
      %v239 = vsub.s32 0, %v238
      %v240 = vrot.slane %v235, %v239
      %v242 = vmul.f32 %v203, %v240
      %v243 = vmul.f32 %v204, %v240
      %v244 = vmul.f32 %v205, %v240
      %v245 = vmul.f32 %v206, %v240
      %v246 = vmul.f32 %v207, %v240
      %v247 = vmul.f32 %v208, %v240
      %v248 = vmul.f32 %v209, %v240
      %v249 = vmul.f32 %v210, %v240
      %v250 = vmul.f32 %v211, %v240
      %v251 = vmul.f32 %v212, %v240
      %v252 = vmul.f32 %v213, %v240
      %v253 = vmul.f32 %v214, %v240
      %v254 = vmul.f32 %v215, %v240
      %v255 = vmul.f32 %v216, %v240
      %v256 = vmul.f32 %v217, %v240
      %v257 = vmul.f32 %v218, %v240
      %v258 = vmul.f32 %v219, %v240
      %v259 = vmul.f32 %v220, %v240
      %v260 = vmul.f32 %v221, %v240
      %v261 = vmul.f32 %v222, %v240
      %v262 = vmul.f32 %v223, %v240
      %v263 = vmul.f32 %v224, %v240
      %v264 = vmul.f32 %v225, %v240
      %v265 = vmul.f32 %v226, %v240
      %v266 = vmul.f32 %v227, %v240
      %v267 = vmul.f32 %v228, %v240
      %v268 = vmul.f32 %v229, %v240
      %v269 = vmul.f32 %v230, %v240
      %v270 = vmul.f32 %v231, %v240
      %v271 = vmul.f32 %v232, %v240
      %v272 = vmul.f32 %v233, %v240
      %v273 = vmul.f32 %v234, %v240
      %v274 = vld [vmem:[%s2] sm:$0x1]
      %v276 = vlaneseq
      %v277 = vshrl.u32 %v276, 7
      %v278 = vsub.s32 0, %v277
      %v279 = vrot.slane %v274, %v278
      %v281 = vadd.f32 %v242, %v279
      %v282 = vadd.f32 %v243, %v279
      %v283 = vadd.f32 %v244, %v279
      %v284 = vadd.f32 %v245, %v279
      %v285 = vadd.f32 %v246, %v279
      %v286 = vadd.f32 %v247, %v279
      %v287 = vadd.f32 %v248, %v279
      %v288 = vadd.f32 %v249, %v279
      %v289 = vadd.f32 %v250, %v279
      %v290 = vadd.f32 %v251, %v279
      %v291 = vadd.f32 %v252, %v279
      %v292 = vadd.f32 %v253, %v279
      %v293 = vadd.f32 %v254, %v279
      %v294 = vadd.f32 %v255, %v279
      %v295 = vadd.f32 %v256, %v279
      %v296 = vadd.f32 %v257, %v279
      %v297 = vadd.f32 %v258, %v279
      %v298 = vadd.f32 %v259, %v279
      %v299 = vadd.f32 %v260, %v279
      %v300 = vadd.f32 %v261, %v279
      %v301 = vadd.f32 %v262, %v279
      %v302 = vadd.f32 %v263, %v279
      %v303 = vadd.f32 %v264, %v279
      %v304 = vadd.f32 %v265, %v279
      %v305 = vadd.f32 %v266, %v279
      %v306 = vadd.f32 %v267, %v279
      %v307 = vadd.f32 %v268, %v279
      %v308 = vadd.f32 %v269, %v279
      %v309 = vadd.f32 %v270, %v279
      %v310 = vadd.f32 %v271, %v279
      %v311 = vadd.f32 %v272, %v279
      %v312 = vadd.f32 %v273, %v279
      %v313 = vmax.f32 %v281, 0.0
      %v314 = vmax.f32 %v282, 0.0
      %v315 = vmax.f32 %v283, 0.0
      %v316 = vmax.f32 %v284, 0.0
      %v317 = vmax.f32 %v285, 0.0
      %v318 = vmax.f32 %v286, 0.0
      %v319 = vmax.f32 %v287, 0.0
      %v320 = vmax.f32 %v288, 0.0
      %v321 = vmax.f32 %v289, 0.0
      %v322 = vmax.f32 %v290, 0.0
      %v323 = vmax.f32 %v291, 0.0
      %v324 = vmax.f32 %v292, 0.0
      %v325 = vmax.f32 %v293, 0.0
      %v326 = vmax.f32 %v294, 0.0
      %v327 = vmax.f32 %v295, 0.0
      %v328 = vmax.f32 %v296, 0.0
      %v329 = vmax.f32 %v297, 0.0
      %v330 = vmax.f32 %v298, 0.0
      %v331 = vmax.f32 %v299, 0.0
      %v332 = vmax.f32 %v300, 0.0
      %v333 = vmax.f32 %v301, 0.0
      %v334 = vmax.f32 %v302, 0.0
      %v335 = vmax.f32 %v303, 0.0
      %v336 = vmax.f32 %v304, 0.0
      %v337 = vmax.f32 %v305, 0.0
      %v338 = vmax.f32 %v306, 0.0
      %v339 = vmax.f32 %v307, 0.0
      %v340 = vmax.f32 %v308, 0.0
      %v341 = vmax.f32 %v309, 0.0
      %v342 = vmax.f32 %v310, 0.0
      %v343 = vmax.f32 %v311, 0.0
      %v344 = vmax.f32 %v312, 0.0
      %345 = vxpose.xlu0.b32.start [1/16] %v313, 128
      %346 = vxpose.xlu0.b32.cont [2/16] %v314, 128
      %347 = vxpose.xlu0.b32.cont [3/16] %v315, 128
      %348 = vxpose.xlu0.b32.cont [4/16] %v316, 128
      %349 = vxpose.xlu0.b32.cont [5/16] %v317, 128
      %350 = vxpose.xlu0.b32.cont [6/16] %v318, 128
      %351 = vxpose.xlu0.b32.cont [7/16] %v319, 128
      %352 = vxpose.xlu0.b32.cont [8/16] %v320, 128
      %353 = vxpose.xlu0.b32.cont [9/16] %v321, 128
      %354 = vxpose.xlu0.b32.cont [10/16] %v322, 128
      %355 = vxpose.xlu0.b32.cont [11/16] %v323, 128
      %356 = vxpose.xlu0.b32.cont [12/16] %v324, 128
      %357 = vxpose.xlu0.b32.cont [13/16] %v325, 128
      %358 = vxpose.xlu0.b32.cont [14/16] %v326, 128
      %359 = vxpose.xlu0.b32.cont [15/16] %v327, 128
      %360 = vxpose.xlu0.b32.end [16/16] %v328, 128
      %v361 = vpop.trf.xlu0
      %v362 = vpop.trf.xlu0
      %v363 = vpop.trf.xlu0
      %v364 = vpop.trf.xlu0
      %v365 = vpop.trf.xlu0
      %v366 = vpop.trf.xlu0
      %v367 = vpop.trf.xlu0
      %v368 = vpop.trf.xlu0
      %v369 = vpop.trf.xlu0
      %v370 = vpop.trf.xlu0
      %v371 = vpop.trf.xlu0
      %v372 = vpop.trf.xlu0
      %v373 = vpop.trf.xlu0
      %v374 = vpop.trf.xlu0
      %v375 = vpop.trf.xlu0
      %v376 = vpop.trf.xlu0
      %377 = vxpose.xlu0.b32.start [1/16] %v329, 128
      %378 = vxpose.xlu0.b32.cont [2/16] %v330, 128
      %379 = vxpose.xlu0.b32.cont [3/16] %v331, 128
      %380 = vxpose.xlu0.b32.cont [4/16] %v332, 128
      %381 = vxpose.xlu0.b32.cont [5/16] %v333, 128
      %382 = vxpose.xlu0.b32.cont [6/16] %v334, 128
      %383 = vxpose.xlu0.b32.cont [7/16] %v335, 128
      %384 = vxpose.xlu0.b32.cont [8/16] %v336, 128
      %385 = vxpose.xlu0.b32.cont [9/16] %v337, 128
      %386 = vxpose.xlu0.b32.cont [10/16] %v338, 128
      %387 = vxpose.xlu0.b32.cont [11/16] %v339, 128
      %388 = vxpose.xlu0.b32.cont [12/16] %v340, 128
      %389 = vxpose.xlu0.b32.cont [13/16] %v341, 128
      %390 = vxpose.xlu0.b32.cont [14/16] %v342, 128
      %391 = vxpose.xlu0.b32.cont [15/16] %v343, 128
      %392 = vxpose.xlu0.b32.end [16/16] %v344, 128
      %v393 = vpop.trf.xlu0
      %v394 = vpop.trf.xlu0
      %v395 = vpop.trf.xlu0
      %v396 = vpop.trf.xlu0
      %v397 = vpop.trf.xlu0
      %v398 = vpop.trf.xlu0
      %v399 = vpop.trf.xlu0
      %v400 = vpop.trf.xlu0
      %v401 = vpop.trf.xlu0
      %v402 = vpop.trf.xlu0
      %v403 = vpop.trf.xlu0
      %v404 = vpop.trf.xlu0
      %v405 = vpop.trf.xlu0
      %v406 = vpop.trf.xlu0
      %v407 = vpop.trf.xlu0
      %v408 = vpop.trf.xlu0
      %409 = vst [vmem:[%s201] sm:$0xff] %v361
      %410 = vst [vmem:[%s201 + $0x8] sm:$0xff] %v393
      %s411 = smul.u32 2, %s19
      %p412 = scmp.lt.s32.totalorder %s18, 1
      %s413 = scalar_select %p412, %s18, 1
      %p414 = scmp.lt.s32.totalorder %s411, 1
      %s415 = scalar_select %p414, %s411, 1
      %s416 = smul.addr %s413, 2
      %s417 = sadd.s32 %s415, %s416
      %s418 = smul.addr %s417, 8
      %s419 = scalar_lea.vmem %s3, %s418
      // Predicated region
      $region33: #{conv_bn_relu_forward.3} parent=31 // pred_check
        %p420 = pneg %p116
      $region34: #{conv_bn_relu_forward.3} parent=31 // pred_check_branch
        %422 = sbr.rel (%p420) target = $region36
      $region35: #{conv_bn_relu_forward.3} parent=31 // pred_region
        %s423 = smul.u32 2, %s19
      $region36: #{conv_bn_relu_forward.3} parent=31 // pred_fallthru
        _
    $region32: #{conv_bn_relu_forward.3} parent=5 // pred_fallthru
      _
    %p424 = scmp.le.s32.totalorder 2, %s9
    // Predicated region
    $region37: #{conv_bn_relu_forward.3} parent=5 // pred_check
      %p425 = pneg %p424
    $region38: #{conv_bn_relu_forward.3} parent=5 // pred_check_branch
      %427 = sbr.rel (%p425) target = $region40
    $region39: #{conv_bn_relu_forward.3} parent=5 // pred_region
      %s428 = ssub.s32 %s9, 2
      // Predicated region
      $region41: #{conv_bn_relu_forward.3} parent=39 // pred_check
        %p429 = pneg %p122
      $region42: #{conv_bn_relu_forward.3} parent=39 // pred_check_branch
        %431 = sbr.rel (%p429) target = $region44
      $region43: #{conv_bn_relu_forward.3} parent=39 // pred_region
        %s432 = smul.u32 2, %s21
        %p433 = scmp.lt.s32.totalorder %s20, 1
        %s434 = scalar_select %p433, %s20, 1
        %p435 = scmp.lt.s32.totalorder %s432, 1
        %s436 = scalar_select %p435, %s432, 1
        %s437 = smul.addr %s434, 2
        %s438 = sadd.s32 %s436, %s437
        %s439 = smul.addr %s438, 8
        %s440 = scalar_lea.vmem %s3, %s439
      $region44: #{conv_bn_relu_forward.3} parent=39 // pred_fallthru
        _
    $region40: #{conv_bn_relu_forward.3} parent=5 // pred_fallthru
      _
  $region6: #{conv_bn_relu_forward.3} parent=0 // loop_footer
    %s13 = sadd.s32 1, %s9
  $region7: #{conv_bn_relu_forward.3} parent=0 // loop_footer_branch
    %8 = sbr.rel target = $region3
  $region8: #{conv_bn_relu_forward.3} parent=0 // loop_exit
    _

// kernel: conv_bn_relu_forward.2
$region0: #{conv_bn_relu_forward.2}
  #allocation0 [shape = 'u32[]', space=smem, size = 0x4, offset = 0x4, fixed_abs, tag = 'smem constant byte address 0x4 - core index']
  #allocation1 [shape = 'u32[144,128]{1,0:T(1,128)}', space=vmem, size = 0x12000, scoped, tag = 'internal scratch']
  #allocation2 [shape = 'f32[256,36]{1,0:T(8,128)}', space=vmem, size = 0x20000, scoped, tag = 'scratch operand']
  %s0 = inlined_call_operand.vmem [shape: f32[2,18,18,4], index: 0, kind: input, shape index: {}]
  %s1 = inlined_call_operand.vmem [shape: f32[36,128], index: 1, kind: input, shape index: {}]
  %s2 = inlined_call_operand.vmem [shape: f32[512,128], index: 2, kind: output, shape index: {0}]
  %s3 = inlined_call_operand.vmem [shape: f32[2,8,128], index: 3, kind: output, shape index: {1}]
  %s4 = inlined_call_operand.vmem [shape: f32[2,8,128], index: 4, kind: output, shape index: {2}]
  %5 = xla_tuple %s2, %s3, %s4
  %s6 = sld [smem:[#allocation0]]
  $region57: #{conv_bn_relu_forward.2} parent=0
    _
  %s8 = ssub.s32 1, %s6
  %s9 = scalar_select 0, %s8, %s6
  loop: start=0, step=1, limit=4
  $region2: #{conv_bn_relu_forward.2} parent=0 // loop_pre_header
    _
  $region3: #{conv_bn_relu_forward.2} parent=0 // loop_header
    %s11 = sphi 0, %s15
    %p12 = scmp.ge.s32.totalorder %s11, 4
    %s21 = sphi 0, %s23
    %s24 = sphi 0, %s21
    %s25 = sphi 0, %s24
    %s41 = sphi 0, %s25
    %s45 = sphi 0, %s45
    %s47 = sphi 0, %s45
    %s48 = sphi 0, %s47
    %s62 = sphi 0, %s48
    %s68 = sphi 0, %s70
    %s71 = sphi 0, %s68
    %s72 = sphi 0, %s71
    %s88 = sphi 0, %s72
    %s94 = sphi 0, %s96
    %s97 = sphi 0, %s94
    %s98 = sphi 0, %s97
    %s114 = sphi 0, %s98
    %s120 = sphi 0, %s122
    %s123 = sphi 0, %s120
    %s124 = sphi 0, %s123
    %s140 = sphi 0, %s124
  $region4: #{conv_bn_relu_forward.2} parent=0 // loop_header_branch
    %14 = sbr.rel (%p12) target = $region8
  $region5: #{conv_bn_relu_forward.2} parent=0 // loop_body
    %s16 = ssub.s32 %s11, 1
    %s17 = ssub.s32 %s11, 2
    %s18 = sadd.s32 %s11, 1
    %s19 = ssub.s32 %s11, %s18
    %p20 = scmp.eq.s32.totalorder %s19, 0
    %s22 = sadd.s32 %s21, 1
    %s23 = scalar_select %p20, %s21, %s22
    %p26 = pneg %p20
    %p27 = scmp.eq.s32.totalorder %s11, 1
    %p28 = por %p26, %p27
    %p29 = scmp.ne.s32.totalorder %s21, %s24
    %p30 = scmp.eq.s32.totalorder %s11, 0
    %p31 = por %p29, %p30
    %p32 = scmp.ne.s32.totalorder %s21, %s24
    %p33 = scmp.eq.s32.totalorder %s16, 1
    %p34 = por %p32, %p33
    %p35 = scmp.ne.s32.totalorder %s24, %s25
    %p36 = scmp.eq.s32.totalorder %s16, 0
    %p37 = por %p35, %p36
    %p38 = scmp.ne.s32.totalorder %s24, %s25
    %p39 = scmp.eq.s32.totalorder %s17, 1
    %p40 = por %p38, %p39
    %p42 = scmp.ne.s32.totalorder %s25, %s41
    %p43 = scmp.eq.s32.totalorder %s17, 0
    %p44 = por %p42, %p43
    %s46 = sadd.s32 %s45, 1
    %p49 = scmp.eq.s32.totalorder %s11, 1
    %p50 = scmp.ne.s32.totalorder %s45, %s47
    %p51 = scmp.eq.s32.totalorder %s11, 0
    %p52 = por %p50, %p51
    %p53 = scmp.ne.s32.totalorder %s45, %s47
    %p54 = scmp.eq.s32.totalorder %s16, 1
    %p55 = por %p53, %p54
    %p56 = scmp.ne.s32.totalorder %s47, %s48
    %p57 = scmp.eq.s32.totalorder %s16, 0
    %p58 = por %p56, %p57
    %p59 = scmp.ne.s32.totalorder %s47, %s48
    %p60 = scmp.eq.s32.totalorder %s17, 1
    %p61 = por %p59, %p60
    %p63 = scmp.ne.s32.totalorder %s48, %s62
    %p64 = scmp.eq.s32.totalorder %s17, 0
    %p65 = por %p63, %p64
    %s66 = ssub.s32 %s11, %s18
    %p67 = scmp.eq.s32.totalorder %s66, 0
    %s69 = sadd.s32 %s68, 1
    %s70 = scalar_select %p67, %s68, %s69
    %p73 = pneg %p67
    %p74 = scmp.eq.s32.totalorder %s11, 1
    %p75 = por %p73, %p74
    %p76 = scmp.ne.s32.totalorder %s68, %s71
    %p77 = scmp.eq.s32.totalorder %s11, 0
    %p78 = por %p76, %p77
    %p79 = scmp.ne.s32.totalorder %s68, %s71
    %p80 = scmp.eq.s32.totalorder %s16, 1
    %p81 = por %p79, %p80
    %p82 = scmp.ne.s32.totalorder %s71, %s72
    %p83 = scmp.eq.s32.totalorder %s16, 0
    %p84 = por %p82, %p83
    %p85 = scmp.ne.s32.totalorder %s71, %s72
    %p86 = scmp.eq.s32.totalorder %s17, 1
    %p87 = por %p85, %p86
    %p89 = scmp.ne.s32.totalorder %s72, %s88
    %p90 = scmp.eq.s32.totalorder %s17, 0
    %p91 = por %p89, %p90
    %s92 = ssub.s32 %s11, %s18
    %p93 = scmp.eq.s32.totalorder %s92, 0
    %s95 = sadd.s32 %s94, 1
    %s96 = scalar_select %p93, %s94, %s95
    %p99 = pneg %p93
    %p100 = scmp.eq.s32.totalorder %s11, 1
    %p101 = por %p99, %p100
    %p102 = scmp.ne.s32.totalorder %s94, %s97
    %p103 = scmp.eq.s32.totalorder %s11, 0
    %p104 = por %p102, %p103
    %p105 = scmp.ne.s32.totalorder %s94, %s97
    %p106 = scmp.eq.s32.totalorder %s16, 1
    %p107 = por %p105, %p106
    %p108 = scmp.ne.s32.totalorder %s97, %s98
    %p109 = scmp.eq.s32.totalorder %s16, 0
    %p110 = por %p108, %p109
    %p111 = scmp.ne.s32.totalorder %s97, %s98
    %p112 = scmp.eq.s32.totalorder %s17, 1
    %p113 = por %p111, %p112
    %p115 = scmp.ne.s32.totalorder %s98, %s114
    %p116 = scmp.eq.s32.totalorder %s17, 0
    %p117 = por %p115, %p116
    %s118 = ssub.s32 %s11, %s18
    %p119 = scmp.eq.s32.totalorder %s118, 0
    %s121 = sadd.s32 %s120, 1
    %s122 = scalar_select %p119, %s120, %s121
    %p125 = pneg %p119
    %p126 = scmp.eq.s32.totalorder %s11, 1
    %p127 = por %p125, %p126
    %p128 = scmp.ne.s32.totalorder %s120, %s123
    %p129 = scmp.eq.s32.totalorder %s11, 0
    %p130 = por %p128, %p129
    %p131 = scmp.ne.s32.totalorder %s120, %s123
    %p132 = scmp.eq.s32.totalorder %s16, 1
    %p133 = por %p131, %p132
    %p134 = scmp.ne.s32.totalorder %s123, %s124
    %p135 = scmp.eq.s32.totalorder %s16, 0
    %p136 = por %p134, %p135
    %p137 = scmp.ne.s32.totalorder %s123, %s124
    %p138 = scmp.eq.s32.totalorder %s17, 1
    %p139 = por %p137, %p138
    %p141 = scmp.ne.s32.totalorder %s124, %s140
    %p142 = scmp.eq.s32.totalorder %s17, 0
    %p143 = por %p141, %p142
    %p144 = scmp.le.s32.totalorder 1, %s11
    %p145 = scmp.lt.s32.totalorder %s11, 3
    %p146 = pnand %p144, %p145
    %p147 = pneg %p146
    // Predicated region
    $region9: #{conv_bn_relu_forward.2} parent=5 // pred_check
      _
    $region10: #{conv_bn_relu_forward.2} parent=5 // pred_check_branch
      %149 = sbr.rel (%p146) target = $region12
    $region11: #{conv_bn_relu_forward.2} parent=5 // pred_region
      %s150 = ssub.s32 %s11, 1
      // Predicated region
      $region13: #{conv_bn_relu_forward.2} parent=11 // pred_check
        %p151 = pneg %p58
      $region14: #{conv_bn_relu_forward.2} parent=11 // pred_check_branch
        %153 = sbr.rel (%p151) target = $region16
      $region15: #{conv_bn_relu_forward.2} parent=11 // pred_region
        _
      $region16: #{conv_bn_relu_forward.2} parent=11 // pred_fallthru
        _
    $region12: #{conv_bn_relu_forward.2} parent=5 // pred_fallthru
      _
    %p154 = scmp.lt.s32.totalorder %s11, 2
    // Predicated region
    $region17: #{conv_bn_relu_forward.2} parent=5 // pred_check
      %p155 = pneg %p154
    $region18: #{conv_bn_relu_forward.2} parent=5 // pred_check_branch
      %157 = sbr.rel (%p155) target = $region20
    $region19: #{conv_bn_relu_forward.2} parent=5 // pred_region
      // Predicated region
      $region21: #{conv_bn_relu_forward.2} parent=19 // pred_check
        %p158 = pneg %p31
      $region22: #{conv_bn_relu_forward.2} parent=19 // pred_check_branch
        %160 = sbr.rel (%p158) target = $region24
      $region23: #{conv_bn_relu_forward.2} parent=19 // pred_region
        %p161 = scmp.lt.s32.totalorder %s11, 1
        %s162 = scalar_select %p161, %s11, 1
        %s163 = smul.addr %s162, 54
        %s164 = smul.addr %s163, 8
        %s165 = scalar_lea.vmem %s0, %s164
      $region24: #{conv_bn_relu_forward.2} parent=19 // pred_fallthru
        _
    $region20: #{conv_bn_relu_forward.2} parent=5 // pred_fallthru
      _
    %p166 = scmp.le.s32.totalorder 1, %s11
    %p167 = scmp.lt.s32.totalorder %s11, 3
    %p168 = pnand %p166, %p167
    %p169 = pneg %p168
    // Predicated region
    $region25: #{conv_bn_relu_forward.2} parent=5 // pred_check
      _
    $region26: #{conv_bn_relu_forward.2} parent=5 // pred_check_branch
      %171 = sbr.rel (%p168) target = $region28
    $region27: #{conv_bn_relu_forward.2} parent=5 // pred_region
      %s172 = ssub.s32 %s11, 1
      %p173 = scmp.lt.s32.totalorder %s16, 1
      %s174 = scalar_select %p173, %s16, 1
      %s175 = smul.addr %s174, 54
      %s176 = smul.addr %s175, 8
      %s177 = scalar_lea.vmem %s0, %s176
      %p178 = pneg %p37
      %p179 = pneg %p34
      %p180 = pneg %p58
      %p181 = pneg %p55
      %p182 = pneg %p84
      %p183 = pneg %p81
      %s184 = smul.u32 32, %s16
      %p185 = scmp.lt.s32.totalorder %s184, 63
      %s186 = scalar_select %p185, %s184, 63
      %s187 = smul.addr %s186, 8
      %s188 = scalar_lea.vmem %s2, %s187
      %p189 = pneg %p110
      %p190 = pneg %p107
      %p191 = scmp.lt.s32.totalorder %s16, 1
      %s192 = scalar_select %p191, %s16, 1
      %s193 = smul.addr %s192, 8
      %s194 = scalar_lea.vmem %s3, %s193
      %p195 = pneg %p136
      %p196 = pneg %p133
      %p197 = scmp.lt.s32.totalorder %s16, 1
      %s198 = scalar_select %p197, %s16, 1
      %s199 = smul.addr %s198, 8
      %s200 = scalar_lea.vmem %s4, %s199
      %p201 = scmp.lt.s32.totalorder %s16, 1
      %s202 = scalar_select %p201, %s16, 1
      %s203 = smul.addr %s202, 54
      %s204 = smul.addr %s203, 8
      %s205 = scalar_lea.vmem %s0, %s204
      %s206 = smul.u32 32, %s16
      %p207 = scmp.lt.s32.totalorder %s206, 63
      %s208 = scalar_select %p207, %s206, 63
      %s209 = smul.addr %s208, 8
      %s210 = scalar_lea.vmem %s2, %s209
      %s211 = smul.u32 32, %s16
      %p212 = scmp.lt.s32.totalorder %s16, 1
      %s213 = scalar_select %p212, %s16, 1
      %s214 = smul.addr %s213, 8
      %s215 = scalar_lea.vmem %s3, %s214
      %p216 = scmp.lt.s32.totalorder %s16, 1
      %s217 = scalar_select %p216, %s16, 1
      %s218 = smul.addr %s217, 8
      %s219 = scalar_lea.vmem %s4, %s218
      %v220 = vld [vmem:[%s205] sm:$0xff]
      %v221 = vld [vmem:[%s205 + $0x8] sm:$0xff]
      %v222 = vld [vmem:[%s205 + $0x18] sm:$0xff]
      %v223 = vld [vmem:[%s205 + $0x20] sm:$0xff]
      %v224 = vld [vmem:[%s205 + $0x30] sm:$0xff]
      %v225 = vld [vmem:[%s205 + $0x38] sm:$0xff]
      %v226 = vld [vmem:[%s205 + $0x48] sm:$0xff]
      %v227 = vld [vmem:[%s205 + $0x50] sm:$0xff]
      %v228 = vld [vmem:[%s205 + $0x60] sm:$0xff]
      %v229 = vld [vmem:[%s205 + $0x68] sm:$0xff]
      %v230 = vld [vmem:[%s205 + $0x78] sm:$0xff]
      %v231 = vld [vmem:[%s205 + $0x80] sm:$0xff]
      %v232 = vld [vmem:[%s205 + $0x90] sm:$0xff]
      %v233 = vld [vmem:[%s205 + $0x98] sm:$0xff]
      %v234 = vld [vmem:[%s205 + $0xa8] sm:$0xff]
      %v235 = vld [vmem:[%s205 + $0xb0] sm:$0xff]
      %v236 = vld [vmem:[%s205 + $0xc0] sm:$0xff]
      %v237 = vld [vmem:[%s205 + $0xc8] sm:$0xff]
      %v238 = vld [vmem:[%s205 + $0xd8] sm:$0xff]
      %v239 = vld [vmem:[%s205 + $0xe0] sm:$0xff]
      %v240 = vld [vmem:[%s205 + $0xf0] sm:$0xff]
      %v241 = vld [vmem:[%s205 + $0xf8] sm:$0xff]
      %v242 = vld [vmem:[%s205 + $0x108] sm:$0xff]
      %v243 = vld [vmem:[%s205 + $0x110] sm:$0xff]
      %v244 = vld [vmem:[%s205 + $0x120] sm:$0xff]
      %v245 = vld [vmem:[%s205 + $0x128] sm:$0xff]
      %v246 = vld [vmem:[%s205 + $0x138] sm:$0xff]
      %v247 = vld [vmem:[%s205 + $0x140] sm:$0xff]
      %v248 = vld [vmem:[%s205 + $0x150] sm:$0xff]
      %v249 = vld [vmem:[%s205 + $0x158] sm:$0xff]
      %v250 = vld [vmem:[%s205 + $0x168] sm:$0xff]
      %v251 = vld [vmem:[%s205 + $0x170] sm:$0xff]
      %vm252 = vcmask 31744
      %253 = vst.msk [vmem:[#allocation2] sm:$0xff] %vm252, %v220
      %254 = vst.msk [vmem:[#allocation2 + $0x8] sm:$0xff] %vm252, %v221
      %255 = vst.msk [vmem:[#allocation2 + $0x10] sm:$0xff] %vm252, %v222
      %256 = vst.msk [vmem:[#allocation2 + $0x18] sm:$0xff] %vm252, %v223
      %257 = vst.msk [vmem:[#allocation2 + $0x20] sm:$0xff] %vm252, %v224
      %258 = vst.msk [vmem:[#allocation2 + $0x28] sm:$0xff] %vm252, %v225
      %259 = vst.msk [vmem:[#allocation2 + $0x30] sm:$0xff] %vm252, %v226
      %260 = vst.msk [vmem:[#allocation2 + $0x38] sm:$0xff] %vm252, %v227
      %261 = vst.msk [vmem:[#allocation2 + $0x40] sm:$0xff] %vm252, %v228
      %262 = vst.msk [vmem:[#allocation2 + $0x48] sm:$0xff] %vm252, %v229
      %263 = vst.msk [vmem:[#allocation2 + $0x50] sm:$0xff] %vm252, %v230
      %264 = vst.msk [vmem:[#allocation2 + $0x58] sm:$0xff] %vm252, %v231
      %265 = vst.msk [vmem:[#allocation2 + $0x60] sm:$0xff] %vm252, %v232
      %266 = vst.msk [vmem:[#allocation2 + $0x68] sm:$0xff] %vm252, %v233
      %267 = vst.msk [vmem:[#allocation2 + $0x70] sm:$0xff] %vm252, %v234
      %268 = vst.msk [vmem:[#allocation2 + $0x78] sm:$0xff] %vm252, %v235
      %269 = vst.msk [vmem:[#allocation2 + $0x80] sm:$0xff] %vm252, %v236
      %270 = vst.msk [vmem:[#allocation2 + $0x88] sm:$0xff] %vm252, %v237
      %271 = vst.msk [vmem:[#allocation2 + $0x90] sm:$0xff] %vm252, %v238
      %272 = vst.msk [vmem:[#allocation2 + $0x98] sm:$0xff] %vm252, %v239
      %273 = vst.msk [vmem:[#allocation2 + $0xa0] sm:$0xff] %vm252, %v240
      %274 = vst.msk [vmem:[#allocation2 + $0xa8] sm:$0xff] %vm252, %v241
      %275 = vst.msk [vmem:[#allocation2 + $0xb0] sm:$0xff] %vm252, %v242
      %276 = vst.msk [vmem:[#allocation2 + $0xb8] sm:$0xff] %vm252, %v243
      %277 = vst.msk [vmem:[#allocation2 + $0xc0] sm:$0xff] %vm252, %v244
      %278 = vst.msk [vmem:[#allocation2 + $0xc8] sm:$0xff] %vm252, %v245
      %279 = vst.msk [vmem:[#allocation2 + $0xd0] sm:$0xff] %vm252, %v246
      %280 = vst.msk [vmem:[#allocation2 + $0xd8] sm:$0xff] %vm252, %v247
      %281 = vst.msk [vmem:[#allocation2 + $0xe0] sm:$0xff] %vm252, %v248
      %282 = vst.msk [vmem:[#allocation2 + $0xe8] sm:$0xff] %vm252, %v249
      %283 = vst.msk [vmem:[#allocation2 + $0xf0] sm:$0xff] %vm252, %v250
      %284 = vst.msk [vmem:[#allocation2 + $0xf8] sm:$0xff] %vm252, %v251
      %v285 = vld [vmem:[%s205 + $0x1] sm:$0xff]
      %v286 = vld [vmem:[%s205 + $0x9] sm:$0xff]
      %v287 = vld [vmem:[%s205 + $0x19] sm:$0xff]
      %v288 = vld [vmem:[%s205 + $0x21] sm:$0xff]
      %v289 = vld [vmem:[%s205 + $0x31] sm:$0xff]
      %v290 = vld [vmem:[%s205 + $0x39] sm:$0xff]
      %v291 = vld [vmem:[%s205 + $0x49] sm:$0xff]
      %v292 = vld [vmem:[%s205 + $0x51] sm:$0xff]
      %v293 = vld [vmem:[%s205 + $0x61] sm:$0xff]
      %v294 = vld [vmem:[%s205 + $0x69] sm:$0xff]
      %v295 = vld [vmem:[%s205 + $0x79] sm:$0xff]
      %v296 = vld [vmem:[%s205 + $0x81] sm:$0xff]
      %v297 = vld [vmem:[%s205 + $0x91] sm:$0xff]
      %v298 = vld [vmem:[%s205 + $0x99] sm:$0xff]
      %v299 = vld [vmem:[%s205 + $0xa9] sm:$0xff]
      %v300 = vld [vmem:[%s205 + $0xb1] sm:$0xff]
      %v301 = vld [vmem:[%s205 + $0xc1] sm:$0xff]
      %v302 = vld [vmem:[%s205 + $0xc9] sm:$0xff]
      %v303 = vld [vmem:[%s205 + $0xd9] sm:$0xff]
      %v304 = vld [vmem:[%s205 + $0xe1] sm:$0xff]
      %v305 = vld [vmem:[%s205 + $0xf1] sm:$0xff]
      %v306 = vld [vmem:[%s205 + $0xf9] sm:$0xff]
      %v307 = vld [vmem:[%s205 + $0x109] sm:$0xff]
      %v308 = vld [vmem:[%s205 + $0x111] sm:$0xff]
      %v309 = vld [vmem:[%s205 + $0x121] sm:$0xff]
      %v310 = vld [vmem:[%s205 + $0x129] sm:$0xff]
      %v311 = vld [vmem:[%s205 + $0x139] sm:$0xff]
      %v312 = vld [vmem:[%s205 + $0x141] sm:$0xff]
      %v313 = vld [vmem:[%s205 + $0x151] sm:$0xff]
      %v314 = vld [vmem:[%s205 + $0x159] sm:$0xff]
      %v315 = vld [vmem:[%s205 + $0x169] sm:$0xff]
      %v316 = vld [vmem:[%s205 + $0x171] sm:$0xff]
      %349 = vrot.lane.b32.xlu0 %v285, 4
      %v350 = vpop.permute.xlu0 %349
      %351 = vrot.lane.b32.xlu0 %v286, 4
      %v352 = vpop.permute.xlu0 %351
      %353 = vrot.lane.b32.xlu0 %v287, 4
      %v354 = vpop.permute.xlu0 %353
      %355 = vrot.lane.b32.xlu0 %v288, 4
      %v356 = vpop.permute.xlu0 %355
      %357 = vrot.lane.b32.xlu0 %v289, 4
      %v358 = vpop.permute.xlu0 %357
      %359 = vrot.lane.b32.xlu0 %v290, 4
      %v360 = vpop.permute.xlu0 %359
      %361 = vrot.lane.b32.xlu0 %v291, 4
      %v362 = vpop.permute.xlu0 %361
      %363 = vrot.lane.b32.xlu0 %v292, 4
      %v364 = vpop.permute.xlu0 %363
      %365 = vrot.lane.b32.xlu0 %v293, 4
      %v366 = vpop.permute.xlu0 %365
      %367 = vrot.lane.b32.xlu0 %v294, 4
      %v368 = vpop.permute.xlu0 %367
      %369 = vrot.lane.b32.xlu0 %v295, 4
      %v370 = vpop.permute.xlu0 %369
      %371 = vrot.lane.b32.xlu0 %v296, 4
      %v372 = vpop.permute.xlu0 %371
      %373 = vrot.lane.b32.xlu0 %v297, 4
      %v374 = vpop.permute.xlu0 %373
      %375 = vrot.lane.b32.xlu0 %v298, 4
      %v376 = vpop.permute.xlu0 %375
      %377 = vrot.lane.b32.xlu0 %v299, 4
      %v378 = vpop.permute.xlu0 %377
      %379 = vrot.lane.b32.xlu0 %v300, 4
      %v380 = vpop.permute.xlu0 %379
      %381 = vrot.lane.b32.xlu0 %v301, 4
      %v382 = vpop.permute.xlu0 %381
      %383 = vrot.lane.b32.xlu0 %v302, 4
      %v384 = vpop.permute.xlu0 %383
      %385 = vrot.lane.b32.xlu0 %v303, 4
      %v386 = vpop.permute.xlu0 %385
      %387 = vrot.lane.b32.xlu0 %v304, 4
      %v388 = vpop.permute.xlu0 %387
      %389 = vrot.lane.b32.xlu0 %v305, 4
      %v390 = vpop.permute.xlu0 %389
      %391 = vrot.lane.b32.xlu0 %v306, 4
      %v392 = vpop.permute.xlu0 %391
      %393 = vrot.lane.b32.xlu0 %v307, 4
      %v394 = vpop.permute.xlu0 %393
      %395 = vrot.lane.b32.xlu0 %v308, 4
      %v396 = vpop.permute.xlu0 %395
      %397 = vrot.lane.b32.xlu0 %v309, 4
      %v398 = vpop.permute.xlu0 %397
      %399 = vrot.lane.b32.xlu0 %v310, 4
      %v400 = vpop.permute.xlu0 %399
      %401 = vrot.lane.b32.xlu0 %v311, 4
      %v402 = vpop.permute.xlu0 %401
      %403 = vrot.lane.b32.xlu0 %v312, 4
      %v404 = vpop.permute.xlu0 %403
      %405 = vrot.lane.b32.xlu0 %v313, 4
      %v406 = vpop.permute.xlu0 %405
      %407 = vrot.lane.b32.xlu0 %v314, 4
      %v408 = vpop.permute.xlu0 %407
      %409 = vrot.lane.b32.xlu0 %v315, 4
      %v410 = vpop.permute.xlu0 %409
      %411 = vrot.lane.b32.xlu0 %v316, 4
      %v412 = vpop.permute.xlu0 %411
      %vm445 = vcmask 64544
      %446 = vst.msk [vmem:[#allocation2] sm:$0xff] %vm445, %v350
      %447 = vst.msk [vmem:[#allocation2 + $0x8] sm:$0xff] %vm445, %v352
      %448 = vst.msk [vmem:[#allocation2 + $0x10] sm:$0xff] %vm445, %v354
      %449 = vst.msk [vmem:[#allocation2 + $0x18] sm:$0xff] %vm445, %v356
      %450 = vst.msk [vmem:[#allocation2 + $0x20] sm:$0xff] %vm445, %v358
      %451 = vst.msk [vmem:[#allocation2 + $0x28] sm:$0xff] %vm445, %v360
      %452 = vst.msk [vmem:[#allocation2 + $0x30] sm:$0xff] %vm445, %v362
      %453 = vst.msk [vmem:[#allocation2 + $0x38] sm:$0xff] %vm445, %v364
      %454 = vst.msk [vmem:[#allocation2 + $0x40] sm:$0xff] %vm445, %v366
      %455 = vst.msk [vmem:[#allocation2 + $0x48] sm:$0xff] %vm445, %v368
      %456 = vst.msk [vmem:[#allocation2 + $0x50] sm:$0xff] %vm445, %v370
      %457 = vst.msk [vmem:[#allocation2 + $0x58] sm:$0xff] %vm445, %v372
      %458 = vst.msk [vmem:[#allocation2 + $0x60] sm:$0xff] %vm445, %v374
      %459 = vst.msk [vmem:[#allocation2 + $0x68] sm:$0xff] %vm445, %v376
      %460 = vst.msk [vmem:[#allocation2 + $0x70] sm:$0xff] %vm445, %v378
      %461 = vst.msk [vmem:[#allocation2 + $0x78] sm:$0xff] %vm445, %v380
      %462 = vst.msk [vmem:[#allocation2 + $0x80] sm:$0xff] %vm445, %v382
      %463 = vst.msk [vmem:[#allocation2 + $0x88] sm:$0xff] %vm445, %v384
      %464 = vst.msk [vmem:[#allocation2 + $0x90] sm:$0xff] %vm445, %v386
      %465 = vst.msk [vmem:[#allocation2 + $0x98] sm:$0xff] %vm445, %v388
      %466 = vst.msk [vmem:[#allocation2 + $0xa0] sm:$0xff] %vm445, %v390
      %467 = vst.msk [vmem:[#allocation2 + $0xa8] sm:$0xff] %vm445, %v392
      %468 = vst.msk [vmem:[#allocation2 + $0xb0] sm:$0xff] %vm445, %v394
      %469 = vst.msk [vmem:[#allocation2 + $0xb8] sm:$0xff] %vm445, %v396
      %470 = vst.msk [vmem:[#allocation2 + $0xc0] sm:$0xff] %vm445, %v398
      %471 = vst.msk [vmem:[#allocation2 + $0xc8] sm:$0xff] %vm445, %v400
      %472 = vst.msk [vmem:[#allocation2 + $0xd0] sm:$0xff] %vm445, %v402
      %473 = vst.msk [vmem:[#allocation2 + $0xd8] sm:$0xff] %vm445, %v404
      %474 = vst.msk [vmem:[#allocation2 + $0xe0] sm:$0xff] %vm445, %v406
      %475 = vst.msk [vmem:[#allocation2 + $0xe8] sm:$0xff] %vm445, %v408
      %476 = vst.msk [vmem:[#allocation2 + $0xf0] sm:$0xff] %vm445, %v410
      %477 = vst.msk [vmem:[#allocation2 + $0xf8] sm:$0xff] %vm445, %v412
      %v478 = vld [vmem:[%s205 + $0x2] sm:$0xff]
      %v479 = vld [vmem:[%s205 + $0xa] sm:$0xff]
      %v480 = vld [vmem:[%s205 + $0x1a] sm:$0xff]
      %v481 = vld [vmem:[%s205 + $0x22] sm:$0xff]
      %v482 = vld [vmem:[%s205 + $0x32] sm:$0xff]
      %v483 = vld [vmem:[%s205 + $0x3a] sm:$0xff]
      %v484 = vld [vmem:[%s205 + $0x4a] sm:$0xff]
      %v485 = vld [vmem:[%s205 + $0x52] sm:$0xff]
      %v486 = vld [vmem:[%s205 + $0x62] sm:$0xff]
      %v487 = vld [vmem:[%s205 + $0x6a] sm:$0xff]
      %v488 = vld [vmem:[%s205 + $0x7a] sm:$0xff]
      %v489 = vld [vmem:[%s205 + $0x82] sm:$0xff]
      %v490 = vld [vmem:[%s205 + $0x92] sm:$0xff]
      %v491 = vld [vmem:[%s205 + $0x9a] sm:$0xff]
      %v492 = vld [vmem:[%s205 + $0xaa] sm:$0xff]
      %v493 = vld [vmem:[%s205 + $0xb2] sm:$0xff]
      %v494 = vld [vmem:[%s205 + $0xc2] sm:$0xff]
      %v495 = vld [vmem:[%s205 + $0xca] sm:$0xff]
      %v496 = vld [vmem:[%s205 + $0xda] sm:$0xff]
      %v497 = vld [vmem:[%s205 + $0xe2] sm:$0xff]
      %v498 = vld [vmem:[%s205 + $0xf2] sm:$0xff]
      %v499 = vld [vmem:[%s205 + $0xfa] sm:$0xff]
      %v500 = vld [vmem:[%s205 + $0x10a] sm:$0xff]
      %v501 = vld [vmem:[%s205 + $0x112] sm:$0xff]
      %v502 = vld [vmem:[%s205 + $0x122] sm:$0xff]
      %v503 = vld [vmem:[%s205 + $0x12a] sm:$0xff]
      %v504 = vld [vmem:[%s205 + $0x13a] sm:$0xff]
      %v505 = vld [vmem:[%s205 + $0x142] sm:$0xff]
      %v506 = vld [vmem:[%s205 + $0x152] sm:$0xff]
      %v507 = vld [vmem:[%s205 + $0x15a] sm:$0xff]
      %v508 = vld [vmem:[%s205 + $0x16a] sm:$0xff]
      %v509 = vld [vmem:[%s205 + $0x172] sm:$0xff]
      %542 = vrot.lane.b32.xlu0 %v478, 8
      %v543 = vpop.permute.xlu0 %542
      %544 = vrot.lane.b32.xlu0 %v479, 8
      %v545 = vpop.permute.xlu0 %544
      %546 = vrot.lane.b32.xlu0 %v480, 8
      %v547 = vpop.permute.xlu0 %546
      %548 = vrot.lane.b32.xlu0 %v481, 8
      %v549 = vpop.permute.xlu0 %548
      %550 = vrot.lane.b32.xlu0 %v482, 8
      %v551 = vpop.permute.xlu0 %550
      %552 = vrot.lane.b32.xlu0 %v483, 8
      %v553 = vpop.permute.xlu0 %552
      %554 = vrot.lane.b32.xlu0 %v484, 8
      %v555 = vpop.permute.xlu0 %554
      %556 = vrot.lane.b32.xlu0 %v485, 8
      %v557 = vpop.permute.xlu0 %556
      %558 = vrot.lane.b32.xlu0 %v486, 8
      %v559 = vpop.permute.xlu0 %558
      %560 = vrot.lane.b32.xlu0 %v487, 8
      %v561 = vpop.permute.xlu0 %560
      %562 = vrot.lane.b32.xlu0 %v488, 8
      %v563 = vpop.permute.xlu0 %562
      %564 = vrot.lane.b32.xlu0 %v489, 8
      %v565 = vpop.permute.xlu0 %564
      %566 = vrot.lane.b32.xlu0 %v490, 8
      %v567 = vpop.permute.xlu0 %566
      %568 = vrot.lane.b32.xlu0 %v491, 8
      %v569 = vpop.permute.xlu0 %568
      %570 = vrot.lane.b32.xlu0 %v492, 8
      %v571 = vpop.permute.xlu0 %570
      %572 = vrot.lane.b32.xlu0 %v493, 8
      %v573 = vpop.permute.xlu0 %572
      %574 = vrot.lane.b32.xlu0 %v494, 8
      %v575 = vpop.permute.xlu0 %574
      %576 = vrot.lane.b32.xlu0 %v495, 8
      %v577 = vpop.permute.xlu0 %576
      %578 = vrot.lane.b32.xlu0 %v496, 8
      %v579 = vpop.permute.xlu0 %578
      %580 = vrot.lane.b32.xlu0 %v497, 8
      %v581 = vpop.permute.xlu0 %580
      %582 = vrot.lane.b32.xlu0 %v498, 8
      %v583 = vpop.permute.xlu0 %582
      %584 = vrot.lane.b32.xlu0 %v499, 8
      %v585 = vpop.permute.xlu0 %584
      %586 = vrot.lane.b32.xlu0 %v500, 8
      %v587 = vpop.permute.xlu0 %586
      %588 = vrot.lane.b32.xlu0 %v501, 8
      %v589 = vpop.permute.xlu0 %588
      %590 = vrot.lane.b32.xlu0 %v502, 8
      %v591 = vpop.permute.xlu0 %590
      %592 = vrot.lane.b32.xlu0 %v503, 8
      %v593 = vpop.permute.xlu0 %592
      %594 = vrot.lane.b32.xlu0 %v504, 8
      %v595 = vpop.permute.xlu0 %594
      %596 = vrot.lane.b32.xlu0 %v505, 8
      %v597 = vpop.permute.xlu0 %596
      %598 = vrot.lane.b32.xlu0 %v506, 8
      %v599 = vpop.permute.xlu0 %598
      %600 = vrot.lane.b32.xlu0 %v507, 8
      %v601 = vpop.permute.xlu0 %600
      %602 = vrot.lane.b32.xlu0 %v508, 8
      %v603 = vpop.permute.xlu0 %602
      %604 = vrot.lane.b32.xlu0 %v509, 8
      %v605 = vpop.permute.xlu0 %604
      %vm638 = vcmask 97344
      %639 = vst.msk [vmem:[#allocation2] sm:$0xff] %vm638, %v543
      %640 = vst.msk [vmem:[#allocation2 + $0x8] sm:$0xff] %vm638, %v545
      %641 = vst.msk [vmem:[#allocation2 + $0x10] sm:$0xff] %vm638, %v547
      %642 = vst.msk [vmem:[#allocation2 + $0x18] sm:$0xff] %vm638, %v549
      %643 = vst.msk [vmem:[#allocation2 + $0x20] sm:$0xff] %vm638, %v551
      %644 = vst.msk [vmem:[#allocation2 + $0x28] sm:$0xff] %vm638, %v553
      %645 = vst.msk [vmem:[#allocation2 + $0x30] sm:$0xff] %vm638, %v555
      %646 = vst.msk [vmem:[#allocation2 + $0x38] sm:$0xff] %vm638, %v557
      %647 = vst.msk [vmem:[#allocation2 + $0x40] sm:$0xff] %vm638, %v559
      %648 = vst.msk [vmem:[#allocation2 + $0x48] sm:$0xff] %vm638, %v561
      %649 = vst.msk [vmem:[#allocation2 + $0x50] sm:$0xff] %vm638, %v563
      %650 = vst.msk [vmem:[#allocation2 + $0x58] sm:$0xff] %vm638, %v565
      %651 = vst.msk [vmem:[#allocation2 + $0x60] sm:$0xff] %vm638, %v567
      %652 = vst.msk [vmem:[#allocation2 + $0x68] sm:$0xff] %vm638, %v569
      %653 = vst.msk [vmem:[#allocation2 + $0x70] sm:$0xff] %vm638, %v571
      %654 = vst.msk [vmem:[#allocation2 + $0x78] sm:$0xff] %vm638, %v573
      %655 = vst.msk [vmem:[#allocation2 + $0x80] sm:$0xff] %vm638, %v575
      %656 = vst.msk [vmem:[#allocation2 + $0x88] sm:$0xff] %vm638, %v577
      %657 = vst.msk [vmem:[#allocation2 + $0x90] sm:$0xff] %vm638, %v579
      %658 = vst.msk [vmem:[#allocation2 + $0x98] sm:$0xff] %vm638, %v581
      %659 = vst.msk [vmem:[#allocation2 + $0xa0] sm:$0xff] %vm638, %v583
      %660 = vst.msk [vmem:[#allocation2 + $0xa8] sm:$0xff] %vm638, %v585
      %661 = vst.msk [vmem:[#allocation2 + $0xb0] sm:$0xff] %vm638, %v587
      %662 = vst.msk [vmem:[#allocation2 + $0xb8] sm:$0xff] %vm638, %v589
      %663 = vst.msk [vmem:[#allocation2 + $0xc0] sm:$0xff] %vm638, %v591
      %664 = vst.msk [vmem:[#allocation2 + $0xc8] sm:$0xff] %vm638, %v593
      %665 = vst.msk [vmem:[#allocation2 + $0xd0] sm:$0xff] %vm638, %v595
      %666 = vst.msk [vmem:[#allocation2 + $0xd8] sm:$0xff] %vm638, %v597
      %667 = vst.msk [vmem:[#allocation2 + $0xe0] sm:$0xff] %vm638, %v599
      %668 = vst.msk [vmem:[#allocation2 + $0xe8] sm:$0xff] %vm638, %v601
      %669 = vst.msk [vmem:[#allocation2 + $0xf0] sm:$0xff] %vm638, %v603
      %670 = vst.msk [vmem:[#allocation2 + $0xf8] sm:$0xff] %vm638, %v605
      %s671 = scalar_lea.vmem %s205, 24
      %v672 = vld [vmem:[%s671] sm:$0xff]
      %v673 = vld [vmem:[%s671 + $0x8] sm:$0xff]
      %v674 = vld [vmem:[%s671 + $0x18] sm:$0xff]
      %v675 = vld [vmem:[%s671 + $0x20] sm:$0xff]
      %v676 = vld [vmem:[%s671 + $0x30] sm:$0xff]
      %v677 = vld [vmem:[%s671 + $0x38] sm:$0xff]
      %v678 = vld [vmem:[%s671 + $0x48] sm:$0xff]
      %v679 = vld [vmem:[%s671 + $0x50] sm:$0xff]
      %v680 = vld [vmem:[%s671 + $0x60] sm:$0xff]
      %v681 = vld [vmem:[%s671 + $0x68] sm:$0xff]
      %v682 = vld [vmem:[%s671 + $0x78] sm:$0xff]
      %v683 = vld [vmem:[%s671 + $0x80] sm:$0xff]
      %v684 = vld [vmem:[%s671 + $0x90] sm:$0xff]
      %v685 = vld [vmem:[%s671 + $0x98] sm:$0xff]
      %v686 = vld [vmem:[%s671 + $0xa8] sm:$0xff]
      %v687 = vld [vmem:[%s671 + $0xb0] sm:$0xff]
      %v688 = vld [vmem:[%s671 + $0xc0] sm:$0xff]
      %v689 = vld [vmem:[%s671 + $0xc8] sm:$0xff]
      %v690 = vld [vmem:[%s671 + $0xd8] sm:$0xff]
      %v691 = vld [vmem:[%s671 + $0xe0] sm:$0xff]
      %v692 = vld [vmem:[%s671 + $0xf0] sm:$0xff]
      %v693 = vld [vmem:[%s671 + $0xf8] sm:$0xff]
      %v694 = vld [vmem:[%s671 + $0x108] sm:$0xff]
      %v695 = vld [vmem:[%s671 + $0x110] sm:$0xff]
      %v696 = vld [vmem:[%s671 + $0x120] sm:$0xff]
      %v697 = vld [vmem:[%s671 + $0x128] sm:$0xff]
      %v698 = vld [vmem:[%s671 + $0x138] sm:$0xff]
      %v699 = vld [vmem:[%s671 + $0x140] sm:$0xff]
      %v700 = vld [vmem:[%s671 + $0x150] sm:$0xff]
      %v701 = vld [vmem:[%s671 + $0x158] sm:$0xff]
      %v702 = vld [vmem:[%s671 + $0x168] sm:$0xff]
      %v703 = vld [vmem:[%s671 + $0x170] sm:$0xff]
      %736 = vrot.lane.b32.xlu0 %v672, 12
      %v737 = vpop.permute.xlu0 %736
      %738 = vrot.lane.b32.xlu0 %v673, 12
      %v739 = vpop.permute.xlu0 %738
      %740 = vrot.lane.b32.xlu0 %v674, 12
      %v741 = vpop.permute.xlu0 %740
      %742 = vrot.lane.b32.xlu0 %v675, 12
      %v743 = vpop.permute.xlu0 %742
      %744 = vrot.lane.b32.xlu0 %v676, 12
      %v745 = vpop.permute.xlu0 %744
      %746 = vrot.lane.b32.xlu0 %v677, 12
      %v747 = vpop.permute.xlu0 %746
      %748 = vrot.lane.b32.xlu0 %v678, 12
      %v749 = vpop.permute.xlu0 %748
      %750 = vrot.lane.b32.xlu0 %v679, 12
      %v751 = vpop.permute.xlu0 %750
      %752 = vrot.lane.b32.xlu0 %v680, 12
      %v753 = vpop.permute.xlu0 %752
      %754 = vrot.lane.b32.xlu0 %v681, 12
      %v755 = vpop.permute.xlu0 %754
      %756 = vrot.lane.b32.xlu0 %v682, 12
      %v757 = vpop.permute.xlu0 %756
      %758 = vrot.lane.b32.xlu0 %v683, 12
      %v759 = vpop.permute.xlu0 %758
      %760 = vrot.lane.b32.xlu0 %v684, 12
      %v761 = vpop.permute.xlu0 %760
      %762 = vrot.lane.b32.xlu0 %v685, 12
      %v763 = vpop.permute.xlu0 %762
      %764 = vrot.lane.b32.xlu0 %v686, 12
      %v765 = vpop.permute.xlu0 %764
      %766 = vrot.lane.b32.xlu0 %v687, 12
      %v767 = vpop.permute.xlu0 %766
      %768 = vrot.lane.b32.xlu0 %v688, 12
      %v769 = vpop.permute.xlu0 %768
      %770 = vrot.lane.b32.xlu0 %v689, 12
      %v771 = vpop.permute.xlu0 %770
      %772 = vrot.lane.b32.xlu0 %v690, 12
      %v773 = vpop.permute.xlu0 %772
      %774 = vrot.lane.b32.xlu0 %v691, 12
      %v775 = vpop.permute.xlu0 %774
      %776 = vrot.lane.b32.xlu0 %v692, 12
      %v777 = vpop.permute.xlu0 %776
      %778 = vrot.lane.b32.xlu0 %v693, 12
      %v779 = vpop.permute.xlu0 %778
      %780 = vrot.lane.b32.xlu0 %v694, 12
      %v781 = vpop.permute.xlu0 %780
      %782 = vrot.lane.b32.xlu0 %v695, 12
      %v783 = vpop.permute.xlu0 %782
      %784 = vrot.lane.b32.xlu0 %v696, 12
      %v785 = vpop.permute.xlu0 %784
      %786 = vrot.lane.b32.xlu0 %v697, 12
      %v787 = vpop.permute.xlu0 %786
      %788 = vrot.lane.b32.xlu0 %v698, 12
      %v789 = vpop.permute.xlu0 %788
      %790 = vrot.lane.b32.xlu0 %v699, 12
      %v791 = vpop.permute.xlu0 %790
      %792 = vrot.lane.b32.xlu0 %v700, 12
      %v793 = vpop.permute.xlu0 %792
      %794 = vrot.lane.b32.xlu0 %v701, 12
      %v795 = vpop.permute.xlu0 %794
      %796 = vrot.lane.b32.xlu0 %v702, 12
      %v797 = vpop.permute.xlu0 %796
      %798 = vrot.lane.b32.xlu0 %v703, 12
      %v799 = vpop.permute.xlu0 %798
      %vm832 = vcmask 130144
      %833 = vst.msk [vmem:[#allocation2] sm:$0xff] %vm832, %v737
      %834 = vst.msk [vmem:[#allocation2 + $0x8] sm:$0xff] %vm832, %v739
      %835 = vst.msk [vmem:[#allocation2 + $0x10] sm:$0xff] %vm832, %v741
      %836 = vst.msk [vmem:[#allocation2 + $0x18] sm:$0xff] %vm832, %v743
      %837 = vst.msk [vmem:[#allocation2 + $0x20] sm:$0xff] %vm832, %v745
      %838 = vst.msk [vmem:[#allocation2 + $0x28] sm:$0xff] %vm832, %v747
      %839 = vst.msk [vmem:[#allocation2 + $0x30] sm:$0xff] %vm832, %v749
      %840 = vst.msk [vmem:[#allocation2 + $0x38] sm:$0xff] %vm832, %v751
      %841 = vst.msk [vmem:[#allocation2 + $0x40] sm:$0xff] %vm832, %v753
      %842 = vst.msk [vmem:[#allocation2 + $0x48] sm:$0xff] %vm832, %v755
      %843 = vst.msk [vmem:[#allocation2 + $0x50] sm:$0xff] %vm832, %v757
      %844 = vst.msk [vmem:[#allocation2 + $0x58] sm:$0xff] %vm832, %v759
      %845 = vst.msk [vmem:[#allocation2 + $0x60] sm:$0xff] %vm832, %v761
      %846 = vst.msk [vmem:[#allocation2 + $0x68] sm:$0xff] %vm832, %v763
      %847 = vst.msk [vmem:[#allocation2 + $0x70] sm:$0xff] %vm832, %v765
      %848 = vst.msk [vmem:[#allocation2 + $0x78] sm:$0xff] %vm832, %v767
      %849 = vst.msk [vmem:[#allocation2 + $0x80] sm:$0xff] %vm832, %v769
      %850 = vst.msk [vmem:[#allocation2 + $0x88] sm:$0xff] %vm832, %v771
      %851 = vst.msk [vmem:[#allocation2 + $0x90] sm:$0xff] %vm832, %v773
      %852 = vst.msk [vmem:[#allocation2 + $0x98] sm:$0xff] %vm832, %v775
      %853 = vst.msk [vmem:[#allocation2 + $0xa0] sm:$0xff] %vm832, %v777
      %854 = vst.msk [vmem:[#allocation2 + $0xa8] sm:$0xff] %vm832, %v779
      %855 = vst.msk [vmem:[#allocation2 + $0xb0] sm:$0xff] %vm832, %v781
      %856 = vst.msk [vmem:[#allocation2 + $0xb8] sm:$0xff] %vm832, %v783
      %857 = vst.msk [vmem:[#allocation2 + $0xc0] sm:$0xff] %vm832, %v785
      %858 = vst.msk [vmem:[#allocation2 + $0xc8] sm:$0xff] %vm832, %v787
      %859 = vst.msk [vmem:[#allocation2 + $0xd0] sm:$0xff] %vm832, %v789
      %860 = vst.msk [vmem:[#allocation2 + $0xd8] sm:$0xff] %vm832, %v791
      %861 = vst.msk [vmem:[#allocation2 + $0xe0] sm:$0xff] %vm832, %v793
      %862 = vst.msk [vmem:[#allocation2 + $0xe8] sm:$0xff] %vm832, %v795
      %863 = vst.msk [vmem:[#allocation2 + $0xf0] sm:$0xff] %vm832, %v797
      %864 = vst.msk [vmem:[#allocation2 + $0xf8] sm:$0xff] %vm832, %v799
      %v865 = vld [vmem:[%s671 + $0x1] sm:$0xff]
      %v866 = vld [vmem:[%s671 + $0x9] sm:$0xff]
      %v867 = vld [vmem:[%s671 + $0x19] sm:$0xff]
      %v868 = vld [vmem:[%s671 + $0x21] sm:$0xff]
      %v869 = vld [vmem:[%s671 + $0x31] sm:$0xff]
      %v870 = vld [vmem:[%s671 + $0x39] sm:$0xff]
      %v871 = vld [vmem:[%s671 + $0x49] sm:$0xff]
      %v872 = vld [vmem:[%s671 + $0x51] sm:$0xff]
      %v873 = vld [vmem:[%s671 + $0x61] sm:$0xff]
      %v874 = vld [vmem:[%s671 + $0x69] sm:$0xff]
      %v875 = vld [vmem:[%s671 + $0x79] sm:$0xff]
      %v876 = vld [vmem:[%s671 + $0x81] sm:$0xff]
      %v877 = vld [vmem:[%s671 + $0x91] sm:$0xff]
      %v878 = vld [vmem:[%s671 + $0x99] sm:$0xff]
      %v879 = vld [vmem:[%s671 + $0xa9] sm:$0xff]
      %v880 = vld [vmem:[%s671 + $0xb1] sm:$0xff]
      %v881 = vld [vmem:[%s671 + $0xc1] sm:$0xff]
      %v882 = vld [vmem:[%s671 + $0xc9] sm:$0xff]
      %v883 = vld [vmem:[%s671 + $0xd9] sm:$0xff]
      %v884 = vld [vmem:[%s671 + $0xe1] sm:$0xff]
      %v885 = vld [vmem:[%s671 + $0xf1] sm:$0xff]
      %v886 = vld [vmem:[%s671 + $0xf9] sm:$0xff]
      %v887 = vld [vmem:[%s671 + $0x109] sm:$0xff]
      %v888 = vld [vmem:[%s671 + $0x111] sm:$0xff]
      %v889 = vld [vmem:[%s671 + $0x121] sm:$0xff]
      %v890 = vld [vmem:[%s671 + $0x129] sm:$0xff]
      %v891 = vld [vmem:[%s671 + $0x139] sm:$0xff]
      %v892 = vld [vmem:[%s671 + $0x141] sm:$0xff]
      %v893 = vld [vmem:[%s671 + $0x151] sm:$0xff]
      %v894 = vld [vmem:[%s671 + $0x159] sm:$0xff]
      %v895 = vld [vmem:[%s671 + $0x169] sm:$0xff]
      %v896 = vld [vmem:[%s671 + $0x171] sm:$0xff]
      %929 = vrot.lane.b32.xlu0 %v865, 16
      %v930 = vpop.permute.xlu0 %929
      %931 = vrot.lane.b32.xlu0 %v866, 16
      %v932 = vpop.permute.xlu0 %931
      %933 = vrot.lane.b32.xlu0 %v867, 16
      %v934 = vpop.permute.xlu0 %933
      %935 = vrot.lane.b32.xlu0 %v868, 16
      %v936 = vpop.permute.xlu0 %935
      %937 = vrot.lane.b32.xlu0 %v869, 16
      %v938 = vpop.permute.xlu0 %937
      %939 = vrot.lane.b32.xlu0 %v870, 16
      %v940 = vpop.permute.xlu0 %939
      %941 = vrot.lane.b32.xlu0 %v871, 16
      %v942 = vpop.permute.xlu0 %941
      %943 = vrot.lane.b32.xlu0 %v872, 16
      %v944 = vpop.permute.xlu0 %943
      %945 = vrot.lane.b32.xlu0 %v873, 16
      %v946 = vpop.permute.xlu0 %945
      %947 = vrot.lane.b32.xlu0 %v874, 16
      %v948 = vpop.permute.xlu0 %947
      %949 = vrot.lane.b32.xlu0 %v875, 16
      %v950 = vpop.permute.xlu0 %949
      %951 = vrot.lane.b32.xlu0 %v876, 16
      %v952 = vpop.permute.xlu0 %951
      %953 = vrot.lane.b32.xlu0 %v877, 16
      %v954 = vpop.permute.xlu0 %953
      %955 = vrot.lane.b32.xlu0 %v878, 16
      %v956 = vpop.permute.xlu0 %955
      %957 = vrot.lane.b32.xlu0 %v879, 16
      %v958 = vpop.permute.xlu0 %957
      %959 = vrot.lane.b32.xlu0 %v880, 16
      %v960 = vpop.permute.xlu0 %959
      %961 = vrot.lane.b32.xlu0 %v881, 16
      %v962 = vpop.permute.xlu0 %961
      %963 = vrot.lane.b32.xlu0 %v882, 16
      %v964 = vpop.permute.xlu0 %963
      %965 = vrot.lane.b32.xlu0 %v883, 16
      %v966 = vpop.permute.xlu0 %965
      %967 = vrot.lane.b32.xlu0 %v884, 16
      %v968 = vpop.permute.xlu0 %967
      %969 = vrot.lane.b32.xlu0 %v885, 16
      %v970 = vpop.permute.xlu0 %969
      %971 = vrot.lane.b32.xlu0 %v886, 16
      %v972 = vpop.permute.xlu0 %971
      %973 = vrot.lane.b32.xlu0 %v887, 16
      %v974 = vpop.permute.xlu0 %973
      %975 = vrot.lane.b32.xlu0 %v888, 16
      %v976 = vpop.permute.xlu0 %975
      %977 = vrot.lane.b32.xlu0 %v889, 16
      %v978 = vpop.permute.xlu0 %977
      %979 = vrot.lane.b32.xlu0 %v890, 16
      %v980 = vpop.permute.xlu0 %979
      %981 = vrot.lane.b32.xlu0 %v891, 16
      %v982 = vpop.permute.xlu0 %981
      %983 = vrot.lane.b32.xlu0 %v892, 16
      %v984 = vpop.permute.xlu0 %983
      %985 = vrot.lane.b32.xlu0 %v893, 16
      %v986 = vpop.permute.xlu0 %985
      %987 = vrot.lane.b32.xlu0 %v894, 16
      %v988 = vpop.permute.xlu0 %987
      %989 = vrot.lane.b32.xlu0 %v895, 16
      %v990 = vpop.permute.xlu0 %989
      %991 = vrot.lane.b32.xlu0 %v896, 16
      %v992 = vpop.permute.xlu0 %991
      %vm1025 = vcmask 162944
      %1026 = vst.msk [vmem:[#allocation2] sm:$0xff] %vm1025, %v930
      %1027 = vst.msk [vmem:[#allocation2 + $0x8] sm:$0xff] %vm1025, %v932
      %1028 = vst.msk [vmem:[#allocation2 + $0x10] sm:$0xff] %vm1025, %v934
      %1029 = vst.msk [vmem:[#allocation2 + $0x18] sm:$0xff] %vm1025, %v936
      %1030 = vst.msk [vmem:[#allocation2 + $0x20] sm:$0xff] %vm1025, %v938
      %1031 = vst.msk [vmem:[#allocation2 + $0x28] sm:$0xff] %vm1025, %v940
      %1032 = vst.msk [vmem:[#allocation2 + $0x30] sm:$0xff] %vm1025, %v942
      %1033 = vst.msk [vmem:[#allocation2 + $0x38] sm:$0xff] %vm1025, %v944
      %1034 = vst.msk [vmem:[#allocation2 + $0x40] sm:$0xff] %vm1025, %v946
      %1035 = vst.msk [vmem:[#allocation2 + $0x48] sm:$0xff] %vm1025, %v948
      %1036 = vst.msk [vmem:[#allocation2 + $0x50] sm:$0xff] %vm1025, %v950
      %1037 = vst.msk [vmem:[#allocation2 + $0x58] sm:$0xff] %vm1025, %v952
      %1038 = vst.msk [vmem:[#allocation2 + $0x60] sm:$0xff] %vm1025, %v954
      %1039 = vst.msk [vmem:[#allocation2 + $0x68] sm:$0xff] %vm1025, %v956
      %1040 = vst.msk [vmem:[#allocation2 + $0x70] sm:$0xff] %vm1025, %v958
      %1041 = vst.msk [vmem:[#allocation2 + $0x78] sm:$0xff] %vm1025, %v960
      %1042 = vst.msk [vmem:[#allocation2 + $0x80] sm:$0xff] %vm1025, %v962
      %1043 = vst.msk [vmem:[#allocation2 + $0x88] sm:$0xff] %vm1025, %v964
      %1044 = vst.msk [vmem:[#allocation2 + $0x90] sm:$0xff] %vm1025, %v966
      %1045 = vst.msk [vmem:[#allocation2 + $0x98] sm:$0xff] %vm1025, %v968
      %1046 = vst.msk [vmem:[#allocation2 + $0xa0] sm:$0xff] %vm1025, %v970
      %1047 = vst.msk [vmem:[#allocation2 + $0xa8] sm:$0xff] %vm1025, %v972
      %1048 = vst.msk [vmem:[#allocation2 + $0xb0] sm:$0xff] %vm1025, %v974
      %1049 = vst.msk [vmem:[#allocation2 + $0xb8] sm:$0xff] %vm1025, %v976
      %1050 = vst.msk [vmem:[#allocation2 + $0xc0] sm:$0xff] %vm1025, %v978
      %1051 = vst.msk [vmem:[#allocation2 + $0xc8] sm:$0xff] %vm1025, %v980
      %1052 = vst.msk [vmem:[#allocation2 + $0xd0] sm:$0xff] %vm1025, %v982
      %1053 = vst.msk [vmem:[#allocation2 + $0xd8] sm:$0xff] %vm1025, %v984
      %1054 = vst.msk [vmem:[#allocation2 + $0xe0] sm:$0xff] %vm1025, %v986
      %1055 = vst.msk [vmem:[#allocation2 + $0xe8] sm:$0xff] %vm1025, %v988
      %1056 = vst.msk [vmem:[#allocation2 + $0xf0] sm:$0xff] %vm1025, %v990
      %1057 = vst.msk [vmem:[#allocation2 + $0xf8] sm:$0xff] %vm1025, %v992
      %v1058 = vld [vmem:[%s671 + $0x2] sm:$0xff]
      %v1059 = vld [vmem:[%s671 + $0xa] sm:$0xff]
      %v1060 = vld [vmem:[%s671 + $0x1a] sm:$0xff]
      %v1061 = vld [vmem:[%s671 + $0x22] sm:$0xff]
      %v1062 = vld [vmem:[%s671 + $0x32] sm:$0xff]
      %v1063 = vld [vmem:[%s671 + $0x3a] sm:$0xff]
      %v1064 = vld [vmem:[%s671 + $0x4a] sm:$0xff]
      %v1065 = vld [vmem:[%s671 + $0x52] sm:$0xff]
      %v1066 = vld [vmem:[%s671 + $0x62] sm:$0xff]
      %v1067 = vld [vmem:[%s671 + $0x6a] sm:$0xff]
      %v1068 = vld [vmem:[%s671 + $0x7a] sm:$0xff]
      %v1069 = vld [vmem:[%s671 + $0x82] sm:$0xff]
      %v1070 = vld [vmem:[%s671 + $0x92] sm:$0xff]
      %v1071 = vld [vmem:[%s671 + $0x9a] sm:$0xff]
      %v1072 = vld [vmem:[%s671 + $0xaa] sm:$0xff]
      %v1073 = vld [vmem:[%s671 + $0xb2] sm:$0xff]
      %v1074 = vld [vmem:[%s671 + $0xc2] sm:$0xff]
      %v1075 = vld [vmem:[%s671 + $0xca] sm:$0xff]
      %v1076 = vld [vmem:[%s671 + $0xda] sm:$0xff]
      %v1077 = vld [vmem:[%s671 + $0xe2] sm:$0xff]
      %v1078 = vld [vmem:[%s671 + $0xf2] sm:$0xff]
      %v1079 = vld [vmem:[%s671 + $0xfa] sm:$0xff]
      %v1080 = vld [vmem:[%s671 + $0x10a] sm:$0xff]
      %v1081 = vld [vmem:[%s671 + $0x112] sm:$0xff]
      %v1082 = vld [vmem:[%s671 + $0x122] sm:$0xff]
      %v1083 = vld [vmem:[%s671 + $0x12a] sm:$0xff]
      %v1084 = vld [vmem:[%s671 + $0x13a] sm:$0xff]
      %v1085 = vld [vmem:[%s671 + $0x142] sm:$0xff]
      %v1086 = vld [vmem:[%s671 + $0x152] sm:$0xff]
      %v1087 = vld [vmem:[%s671 + $0x15a] sm:$0xff]
      %v1088 = vld [vmem:[%s671 + $0x16a] sm:$0xff]
      %v1089 = vld [vmem:[%s671 + $0x172] sm:$0xff]
      %1122 = vrot.lane.b32.xlu0 %v1058, 20
      %v1123 = vpop.permute.xlu0 %1122
      %1124 = vrot.lane.b32.xlu0 %v1059, 20
      %v1125 = vpop.permute.xlu0 %1124
      %1126 = vrot.lane.b32.xlu0 %v1060, 20
      %v1127 = vpop.permute.xlu0 %1126
      %1128 = vrot.lane.b32.xlu0 %v1061, 20
      %v1129 = vpop.permute.xlu0 %1128
      %1130 = vrot.lane.b32.xlu0 %v1062, 20
      %v1131 = vpop.permute.xlu0 %1130
      %1132 = vrot.lane.b32.xlu0 %v1063, 20
      %v1133 = vpop.permute.xlu0 %1132
      %1134 = vrot.lane.b32.xlu0 %v1064, 20
      %v1135 = vpop.permute.xlu0 %1134
      %1136 = vrot.lane.b32.xlu0 %v1065, 20
      %v1137 = vpop.permute.xlu0 %1136
      %1138 = vrot.lane.b32.xlu0 %v1066, 20
      %v1139 = vpop.permute.xlu0 %1138
      %1140 = vrot.lane.b32.xlu0 %v1067, 20
      %v1141 = vpop.permute.xlu0 %1140
      %1142 = vrot.lane.b32.xlu0 %v1068, 20
      %v1143 = vpop.permute.xlu0 %1142
      %1144 = vrot.lane.b32.xlu0 %v1069, 20
      %v1145 = vpop.permute.xlu0 %1144
      %1146 = vrot.lane.b32.xlu0 %v1070, 20
      %v1147 = vpop.permute.xlu0 %1146
      %1148 = vrot.lane.b32.xlu0 %v1071, 20
      %v1149 = vpop.permute.xlu0 %1148
      %1150 = vrot.lane.b32.xlu0 %v1072, 20
      %v1151 = vpop.permute.xlu0 %1150
      %1152 = vrot.lane.b32.xlu0 %v1073, 20
      %v1153 = vpop.permute.xlu0 %1152
      %1154 = vrot.lane.b32.xlu0 %v1074, 20
      %v1155 = vpop.permute.xlu0 %1154
      %1156 = vrot.lane.b32.xlu0 %v1075, 20
      %v1157 = vpop.permute.xlu0 %1156
      %1158 = vrot.lane.b32.xlu0 %v1076, 20
      %v1159 = vpop.permute.xlu0 %1158
      %1160 = vrot.lane.b32.xlu0 %v1077, 20
      %v1161 = vpop.permute.xlu0 %1160
      %1162 = vrot.lane.b32.xlu0 %v1078, 20
      %v1163 = vpop.permute.xlu0 %1162
      %1164 = vrot.lane.b32.xlu0 %v1079, 20
      %v1165 = vpop.permute.xlu0 %1164
      %1166 = vrot.lane.b32.xlu0 %v1080, 20
      %v1167 = vpop.permute.xlu0 %1166
      %1168 = vrot.lane.b32.xlu0 %v1081, 20
      %v1169 = vpop.permute.xlu0 %1168
      %1170 = vrot.lane.b32.xlu0 %v1082, 20
      %v1171 = vpop.permute.xlu0 %1170
      %1172 = vrot.lane.b32.xlu0 %v1083, 20
      %v1173 = vpop.permute.xlu0 %1172
      %1174 = vrot.lane.b32.xlu0 %v1084, 20
      %v1175 = vpop.permute.xlu0 %1174
      %1176 = vrot.lane.b32.xlu0 %v1085, 20
      %v1177 = vpop.permute.xlu0 %1176
      %1178 = vrot.lane.b32.xlu0 %v1086, 20
      %v1179 = vpop.permute.xlu0 %1178
      %1180 = vrot.lane.b32.xlu0 %v1087, 20
      %v1181 = vpop.permute.xlu0 %1180
      %1182 = vrot.lane.b32.xlu0 %v1088, 20
      %v1183 = vpop.permute.xlu0 %1182
      %1184 = vrot.lane.b32.xlu0 %v1089, 20
      %v1185 = vpop.permute.xlu0 %1184
      %vm1218 = vcmask 195744
      %1219 = vst.msk [vmem:[#allocation2] sm:$0xff] %vm1218, %v1123
      %1220 = vst.msk [vmem:[#allocation2 + $0x8] sm:$0xff] %vm1218, %v1125
      %1221 = vst.msk [vmem:[#allocation2 + $0x10] sm:$0xff] %vm1218, %v1127
      %1222 = vst.msk [vmem:[#allocation2 + $0x18] sm:$0xff] %vm1218, %v1129
      %1223 = vst.msk [vmem:[#allocation2 + $0x20] sm:$0xff] %vm1218, %v1131
      %1224 = vst.msk [vmem:[#allocation2 + $0x28] sm:$0xff] %vm1218, %v1133
      %1225 = vst.msk [vmem:[#allocation2 + $0x30] sm:$0xff] %vm1218, %v1135
      %1226 = vst.msk [vmem:[#allocation2 + $0x38] sm:$0xff] %vm1218, %v1137
      %1227 = vst.msk [vmem:[#allocation2 + $0x40] sm:$0xff] %vm1218, %v1139
      %1228 = vst.msk [vmem:[#allocation2 + $0x48] sm:$0xff] %vm1218, %v1141
      %1229 = vst.msk [vmem:[#allocation2 + $0x50] sm:$0xff] %vm1218, %v1143
      %1230 = vst.msk [vmem:[#allocation2 + $0x58] sm:$0xff] %vm1218, %v1145
      %1231 = vst.msk [vmem:[#allocation2 + $0x60] sm:$0xff] %vm1218, %v1147
      %1232 = vst.msk [vmem:[#allocation2 + $0x68] sm:$0xff] %vm1218, %v1149
      %1233 = vst.msk [vmem:[#allocation2 + $0x70] sm:$0xff] %vm1218, %v1151
      %1234 = vst.msk [vmem:[#allocation2 + $0x78] sm:$0xff] %vm1218, %v1153
      %1235 = vst.msk [vmem:[#allocation2 + $0x80] sm:$0xff] %vm1218, %v1155
      %1236 = vst.msk [vmem:[#allocation2 + $0x88] sm:$0xff] %vm1218, %v1157
      %1237 = vst.msk [vmem:[#allocation2 + $0x90] sm:$0xff] %vm1218, %v1159
      %1238 = vst.msk [vmem:[#allocation2 + $0x98] sm:$0xff] %vm1218, %v1161
      %1239 = vst.msk [vmem:[#allocation2 + $0xa0] sm:$0xff] %vm1218, %v1163
      %1240 = vst.msk [vmem:[#allocation2 + $0xa8] sm:$0xff] %vm1218, %v1165
      %1241 = vst.msk [vmem:[#allocation2 + $0xb0] sm:$0xff] %vm1218, %v1167
      %1242 = vst.msk [vmem:[#allocation2 + $0xb8] sm:$0xff] %vm1218, %v1169
      %1243 = vst.msk [vmem:[#allocation2 + $0xc0] sm:$0xff] %vm1218, %v1171
      %1244 = vst.msk [vmem:[#allocation2 + $0xc8] sm:$0xff] %vm1218, %v1173
      %1245 = vst.msk [vmem:[#allocation2 + $0xd0] sm:$0xff] %vm1218, %v1175
      %1246 = vst.msk [vmem:[#allocation2 + $0xd8] sm:$0xff] %vm1218, %v1177
      %1247 = vst.msk [vmem:[#allocation2 + $0xe0] sm:$0xff] %vm1218, %v1179
      %1248 = vst.msk [vmem:[#allocation2 + $0xe8] sm:$0xff] %vm1218, %v1181
      %1249 = vst.msk [vmem:[#allocation2 + $0xf0] sm:$0xff] %vm1218, %v1183
      %1250 = vst.msk [vmem:[#allocation2 + $0xf8] sm:$0xff] %vm1218, %v1185
      %s1251 = scalar_lea.vmem %s205, 48
      %v1252 = vld [vmem:[%s1251] sm:$0xff]
      %v1253 = vld [vmem:[%s1251 + $0x8] sm:$0xff]
      %v1254 = vld [vmem:[%s1251 + $0x18] sm:$0xff]
      %v1255 = vld [vmem:[%s1251 + $0x20] sm:$0xff]
      %v1256 = vld [vmem:[%s1251 + $0x30] sm:$0xff]
      %v1257 = vld [vmem:[%s1251 + $0x38] sm:$0xff]
      %v1258 = vld [vmem:[%s1251 + $0x48] sm:$0xff]
      %v1259 = vld [vmem:[%s1251 + $0x50] sm:$0xff]
      %v1260 = vld [vmem:[%s1251 + $0x60] sm:$0xff]
      %v1261 = vld [vmem:[%s1251 + $0x68] sm:$0xff]
      %v1262 = vld [vmem:[%s1251 + $0x78] sm:$0xff]
      %v1263 = vld [vmem:[%s1251 + $0x80] sm:$0xff]
      %v1264 = vld [vmem:[%s1251 + $0x90] sm:$0xff]
      %v1265 = vld [vmem:[%s1251 + $0x98] sm:$0xff]
      %v1266 = vld [vmem:[%s1251 + $0xa8] sm:$0xff]
      %v1267 = vld [vmem:[%s1251 + $0xb0] sm:$0xff]
      %v1268 = vld [vmem:[%s1251 + $0xc0] sm:$0xff]
      %v1269 = vld [vmem:[%s1251 + $0xc8] sm:$0xff]
      %v1270 = vld [vmem:[%s1251 + $0xd8] sm:$0xff]
      %v1271 = vld [vmem:[%s1251 + $0xe0] sm:$0xff]
      %v1272 = vld [vmem:[%s1251 + $0xf0] sm:$0xff]
      %v1273 = vld [vmem:[%s1251 + $0xf8] sm:$0xff]
      %v1274 = vld [vmem:[%s1251 + $0x108] sm:$0xff]
      %v1275 = vld [vmem:[%s1251 + $0x110] sm:$0xff]
      %v1276 = vld [vmem:[%s1251 + $0x120] sm:$0xff]
      %v1277 = vld [vmem:[%s1251 + $0x128] sm:$0xff]
      %v1278 = vld [vmem:[%s1251 + $0x138] sm:$0xff]
      %v1279 = vld [vmem:[%s1251 + $0x140] sm:$0xff]
      %v1280 = vld [vmem:[%s1251 + $0x150] sm:$0xff]
      %v1281 = vld [vmem:[%s1251 + $0x158] sm:$0xff]
      %v1282 = vld [vmem:[%s1251 + $0x168] sm:$0xff]
      %v1283 = vld [vmem:[%s1251 + $0x170] sm:$0xff]
      %1316 = vrot.lane.b32.xlu0 %v1252, 24
      %v1317 = vpop.permute.xlu0 %1316
      %1318 = vrot.lane.b32.xlu0 %v1253, 24
      %v1319 = vpop.permute.xlu0 %1318
      %1320 = vrot.lane.b32.xlu0 %v1254, 24
      %v1321 = vpop.permute.xlu0 %1320
      %1322 = vrot.lane.b32.xlu0 %v1255, 24
      %v1323 = vpop.permute.xlu0 %1322
      %1324 = vrot.lane.b32.xlu0 %v1256, 24
      %v1325 = vpop.permute.xlu0 %1324
      %1326 = vrot.lane.b32.xlu0 %v1257, 24
      %v1327 = vpop.permute.xlu0 %1326
      %1328 = vrot.lane.b32.xlu0 %v1258, 24
      %v1329 = vpop.permute.xlu0 %1328
      %1330 = vrot.lane.b32.xlu0 %v1259, 24
      %v1331 = vpop.permute.xlu0 %1330
      %1332 = vrot.lane.b32.xlu0 %v1260, 24
      %v1333 = vpop.permute.xlu0 %1332
      %1334 = vrot.lane.b32.xlu0 %v1261, 24
      %v1335 = vpop.permute.xlu0 %1334
      %1336 = vrot.lane.b32.xlu0 %v1262, 24
      %v1337 = vpop.permute.xlu0 %1336
      %1338 = vrot.lane.b32.xlu0 %v1263, 24
      %v1339 = vpop.permute.xlu0 %1338
      %1340 = vrot.lane.b32.xlu0 %v1264, 24
      %v1341 = vpop.permute.xlu0 %1340
      %1342 = vrot.lane.b32.xlu0 %v1265, 24
      %v1343 = vpop.permute.xlu0 %1342
      %1344 = vrot.lane.b32.xlu0 %v1266, 24
      %v1345 = vpop.permute.xlu0 %1344
      %1346 = vrot.lane.b32.xlu0 %v1267, 24
      %v1347 = vpop.permute.xlu0 %1346
      %1348 = vrot.lane.b32.xlu0 %v1268, 24
      %v1349 = vpop.permute.xlu0 %1348
      %1350 = vrot.lane.b32.xlu0 %v1269, 24
      %v1351 = vpop.permute.xlu0 %1350
      %1352 = vrot.lane.b32.xlu0 %v1270, 24
      %v1353 = vpop.permute.xlu0 %1352
      %1354 = vrot.lane.b32.xlu0 %v1271, 24
      %v1355 = vpop.permute.xlu0 %1354
      %1356 = vrot.lane.b32.xlu0 %v1272, 24
      %v1357 = vpop.permute.xlu0 %1356
      %1358 = vrot.lane.b32.xlu0 %v1273, 24
      %v1359 = vpop.permute.xlu0 %1358
      %1360 = vrot.lane.b32.xlu0 %v1274, 24
      %v1361 = vpop.permute.xlu0 %1360
      %1362 = vrot.lane.b32.xlu0 %v1275, 24
      %v1363 = vpop.permute.xlu0 %1362
      %1364 = vrot.lane.b32.xlu0 %v1276, 24
      %v1365 = vpop.permute.xlu0 %1364
      %1366 = vrot.lane.b32.xlu0 %v1277, 24
      %v1367 = vpop.permute.xlu0 %1366
      %1368 = vrot.lane.b32.xlu0 %v1278, 24
      %v1369 = vpop.permute.xlu0 %1368
      %1370 = vrot.lane.b32.xlu0 %v1279, 24
      %v1371 = vpop.permute.xlu0 %1370
      %1372 = vrot.lane.b32.xlu0 %v1280, 24
      %v1373 = vpop.permute.xlu0 %1372
      %1374 = vrot.lane.b32.xlu0 %v1281, 24
      %v1375 = vpop.permute.xlu0 %1374
      %1376 = vrot.lane.b32.xlu0 %v1282, 24
      %v1377 = vpop.permute.xlu0 %1376
      %1378 = vrot.lane.b32.xlu0 %v1283, 24
      %v1379 = vpop.permute.xlu0 %1378
      %vm1412 = vcmask 228544
      %1413 = vst.msk [vmem:[#allocation2] sm:$0xff] %vm1412, %v1317
      %1414 = vst.msk [vmem:[#allocation2 + $0x8] sm:$0xff] %vm1412, %v1319
      %1415 = vst.msk [vmem:[#allocation2 + $0x10] sm:$0xff] %vm1412, %v1321
      %1416 = vst.msk [vmem:[#allocation2 + $0x18] sm:$0xff] %vm1412, %v1323
      %1417 = vst.msk [vmem:[#allocation2 + $0x20] sm:$0xff] %vm1412, %v1325
      %1418 = vst.msk [vmem:[#allocation2 + $0x28] sm:$0xff] %vm1412, %v1327
      %1419 = vst.msk [vmem:[#allocation2 + $0x30] sm:$0xff] %vm1412, %v1329
      %1420 = vst.msk [vmem:[#allocation2 + $0x38] sm:$0xff] %vm1412, %v1331
      %1421 = vst.msk [vmem:[#allocation2 + $0x40] sm:$0xff] %vm1412, %v1333
      %1422 = vst.msk [vmem:[#allocation2 + $0x48] sm:$0xff] %vm1412, %v1335
      %1423 = vst.msk [vmem:[#allocation2 + $0x50] sm:$0xff] %vm1412, %v1337
      %1424 = vst.msk [vmem:[#allocation2 + $0x58] sm:$0xff] %vm1412, %v1339
      %1425 = vst.msk [vmem:[#allocation2 + $0x60] sm:$0xff] %vm1412, %v1341
      %1426 = vst.msk [vmem:[#allocation2 + $0x68] sm:$0xff] %vm1412, %v1343
      %1427 = vst.msk [vmem:[#allocation2 + $0x70] sm:$0xff] %vm1412, %v1345
      %1428 = vst.msk [vmem:[#allocation2 + $0x78] sm:$0xff] %vm1412, %v1347
      %1429 = vst.msk [vmem:[#allocation2 + $0x80] sm:$0xff] %vm1412, %v1349
      %1430 = vst.msk [vmem:[#allocation2 + $0x88] sm:$0xff] %vm1412, %v1351
      %1431 = vst.msk [vmem:[#allocation2 + $0x90] sm:$0xff] %vm1412, %v1353
      %1432 = vst.msk [vmem:[#allocation2 + $0x98] sm:$0xff] %vm1412, %v1355
      %1433 = vst.msk [vmem:[#allocation2 + $0xa0] sm:$0xff] %vm1412, %v1357
      %1434 = vst.msk [vmem:[#allocation2 + $0xa8] sm:$0xff] %vm1412, %v1359
      %1435 = vst.msk [vmem:[#allocation2 + $0xb0] sm:$0xff] %vm1412, %v1361
      %1436 = vst.msk [vmem:[#allocation2 + $0xb8] sm:$0xff] %vm1412, %v1363
      %1437 = vst.msk [vmem:[#allocation2 + $0xc0] sm:$0xff] %vm1412, %v1365
      %1438 = vst.msk [vmem:[#allocation2 + $0xc8] sm:$0xff] %vm1412, %v1367
      %1439 = vst.msk [vmem:[#allocation2 + $0xd0] sm:$0xff] %vm1412, %v1369
      %1440 = vst.msk [vmem:[#allocation2 + $0xd8] sm:$0xff] %vm1412, %v1371
      %1441 = vst.msk [vmem:[#allocation2 + $0xe0] sm:$0xff] %vm1412, %v1373
      %1442 = vst.msk [vmem:[#allocation2 + $0xe8] sm:$0xff] %vm1412, %v1375
      %1443 = vst.msk [vmem:[#allocation2 + $0xf0] sm:$0xff] %vm1412, %v1377
      %1444 = vst.msk [vmem:[#allocation2 + $0xf8] sm:$0xff] %vm1412, %v1379
      %v1445 = vld [vmem:[%s1251 + $0x1] sm:$0xff]
      %v1446 = vld [vmem:[%s1251 + $0x9] sm:$0xff]
      %v1447 = vld [vmem:[%s1251 + $0x19] sm:$0xff]
      %v1448 = vld [vmem:[%s1251 + $0x21] sm:$0xff]
      %v1449 = vld [vmem:[%s1251 + $0x31] sm:$0xff]
      %v1450 = vld [vmem:[%s1251 + $0x39] sm:$0xff]
      %v1451 = vld [vmem:[%s1251 + $0x49] sm:$0xff]
      %v1452 = vld [vmem:[%s1251 + $0x51] sm:$0xff]
      %v1453 = vld [vmem:[%s1251 + $0x61] sm:$0xff]
      %v1454 = vld [vmem:[%s1251 + $0x69] sm:$0xff]
      %v1455 = vld [vmem:[%s1251 + $0x79] sm:$0xff]
      %v1456 = vld [vmem:[%s1251 + $0x81] sm:$0xff]
      %v1457 = vld [vmem:[%s1251 + $0x91] sm:$0xff]
      %v1458 = vld [vmem:[%s1251 + $0x99] sm:$0xff]
      %v1459 = vld [vmem:[%s1251 + $0xa9] sm:$0xff]
      %v1460 = vld [vmem:[%s1251 + $0xb1] sm:$0xff]
      %v1461 = vld [vmem:[%s1251 + $0xc1] sm:$0xff]
      %v1462 = vld [vmem:[%s1251 + $0xc9] sm:$0xff]
      %v1463 = vld [vmem:[%s1251 + $0xd9] sm:$0xff]
      %v1464 = vld [vmem:[%s1251 + $0xe1] sm:$0xff]
      %v1465 = vld [vmem:[%s1251 + $0xf1] sm:$0xff]
      %v1466 = vld [vmem:[%s1251 + $0xf9] sm:$0xff]
      %v1467 = vld [vmem:[%s1251 + $0x109] sm:$0xff]
      %v1468 = vld [vmem:[%s1251 + $0x111] sm:$0xff]
      %v1469 = vld [vmem:[%s1251 + $0x121] sm:$0xff]
      %v1470 = vld [vmem:[%s1251 + $0x129] sm:$0xff]
      %v1471 = vld [vmem:[%s1251 + $0x139] sm:$0xff]
      %v1472 = vld [vmem:[%s1251 + $0x141] sm:$0xff]
      %v1473 = vld [vmem:[%s1251 + $0x151] sm:$0xff]
      %v1474 = vld [vmem:[%s1251 + $0x159] sm:$0xff]
      %v1475 = vld [vmem:[%s1251 + $0x169] sm:$0xff]
      %v1476 = vld [vmem:[%s1251 + $0x171] sm:$0xff]
      %1509 = vrot.lane.b32.xlu0 %v1445, 28
      %v1510 = vpop.permute.xlu0 %1509
      %1511 = vrot.lane.b32.xlu0 %v1446, 28
      %v1512 = vpop.permute.xlu0 %1511
      %1513 = vrot.lane.b32.xlu0 %v1447, 28
      %v1514 = vpop.permute.xlu0 %1513
      %1515 = vrot.lane.b32.xlu0 %v1448, 28
      %v1516 = vpop.permute.xlu0 %1515
      %1517 = vrot.lane.b32.xlu0 %v1449, 28
      %v1518 = vpop.permute.xlu0 %1517
      %1519 = vrot.lane.b32.xlu0 %v1450, 28
      %v1520 = vpop.permute.xlu0 %1519
      %1521 = vrot.lane.b32.xlu0 %v1451, 28
      %v1522 = vpop.permute.xlu0 %1521
      %1523 = vrot.lane.b32.xlu0 %v1452, 28
      %v1524 = vpop.permute.xlu0 %1523
      %1525 = vrot.lane.b32.xlu0 %v1453, 28
      %v1526 = vpop.permute.xlu0 %1525
      %1527 = vrot.lane.b32.xlu0 %v1454, 28
      %v1528 = vpop.permute.xlu0 %1527
      %1529 = vrot.lane.b32.xlu0 %v1455, 28
      %v1530 = vpop.permute.xlu0 %1529
      %1531 = vrot.lane.b32.xlu0 %v1456, 28
      %v1532 = vpop.permute.xlu0 %1531
      %1533 = vrot.lane.b32.xlu0 %v1457, 28
      %v1534 = vpop.permute.xlu0 %1533
      %1535 = vrot.lane.b32.xlu0 %v1458, 28
      %v1536 = vpop.permute.xlu0 %1535
      %1537 = vrot.lane.b32.xlu0 %v1459, 28
      %v1538 = vpop.permute.xlu0 %1537
      %1539 = vrot.lane.b32.xlu0 %v1460, 28
      %v1540 = vpop.permute.xlu0 %1539
      %1541 = vrot.lane.b32.xlu0 %v1461, 28
      %v1542 = vpop.permute.xlu0 %1541
      %1543 = vrot.lane.b32.xlu0 %v1462, 28
      %v1544 = vpop.permute.xlu0 %1543
      %1545 = vrot.lane.b32.xlu0 %v1463, 28
      %v1546 = vpop.permute.xlu0 %1545
      %1547 = vrot.lane.b32.xlu0 %v1464, 28
      %v1548 = vpop.permute.xlu0 %1547
      %1549 = vrot.lane.b32.xlu0 %v1465, 28
      %v1550 = vpop.permute.xlu0 %1549
      %1551 = vrot.lane.b32.xlu0 %v1466, 28
      %v1552 = vpop.permute.xlu0 %1551
      %1553 = vrot.lane.b32.xlu0 %v1467, 28
      %v1554 = vpop.permute.xlu0 %1553
      %1555 = vrot.lane.b32.xlu0 %v1468, 28
      %v1556 = vpop.permute.xlu0 %1555
      %1557 = vrot.lane.b32.xlu0 %v1469, 28
      %v1558 = vpop.permute.xlu0 %1557
      %1559 = vrot.lane.b32.xlu0 %v1470, 28
      %v1560 = vpop.permute.xlu0 %1559
      %1561 = vrot.lane.b32.xlu0 %v1471, 28
      %v1562 = vpop.permute.xlu0 %1561
      %1563 = vrot.lane.b32.xlu0 %v1472, 28
      %v1564 = vpop.permute.xlu0 %1563
      %1565 = vrot.lane.b32.xlu0 %v1473, 28
      %v1566 = vpop.permute.xlu0 %1565
      %1567 = vrot.lane.b32.xlu0 %v1474, 28
      %v1568 = vpop.permute.xlu0 %1567
      %1569 = vrot.lane.b32.xlu0 %v1475, 28
      %v1570 = vpop.permute.xlu0 %1569
      %1571 = vrot.lane.b32.xlu0 %v1476, 28
      %v1572 = vpop.permute.xlu0 %1571
      %vm1605 = vcmask 261344
      %1606 = vst.msk [vmem:[#allocation2] sm:$0xff] %vm1605, %v1510
      %1607 = vst.msk [vmem:[#allocation2 + $0x8] sm:$0xff] %vm1605, %v1512
      %1608 = vst.msk [vmem:[#allocation2 + $0x10] sm:$0xff] %vm1605, %v1514
      %1609 = vst.msk [vmem:[#allocation2 + $0x18] sm:$0xff] %vm1605, %v1516
      %1610 = vst.msk [vmem:[#allocation2 + $0x20] sm:$0xff] %vm1605, %v1518
      %1611 = vst.msk [vmem:[#allocation2 + $0x28] sm:$0xff] %vm1605, %v1520
      %1612 = vst.msk [vmem:[#allocation2 + $0x30] sm:$0xff] %vm1605, %v1522
      %1613 = vst.msk [vmem:[#allocation2 + $0x38] sm:$0xff] %vm1605, %v1524
      %1614 = vst.msk [vmem:[#allocation2 + $0x40] sm:$0xff] %vm1605, %v1526
      %1615 = vst.msk [vmem:[#allocation2 + $0x48] sm:$0xff] %vm1605, %v1528
      %1616 = vst.msk [vmem:[#allocation2 + $0x50] sm:$0xff] %vm1605, %v1530
      %1617 = vst.msk [vmem:[#allocation2 + $0x58] sm:$0xff] %vm1605, %v1532
      %1618 = vst.msk [vmem:[#allocation2 + $0x60] sm:$0xff] %vm1605, %v1534
      %1619 = vst.msk [vmem:[#allocation2 + $0x68] sm:$0xff] %vm1605, %v1536
      %1620 = vst.msk [vmem:[#allocation2 + $0x70] sm:$0xff] %vm1605, %v1538
      %1621 = vst.msk [vmem:[#allocation2 + $0x78] sm:$0xff] %vm1605, %v1540
      %1622 = vst.msk [vmem:[#allocation2 + $0x80] sm:$0xff] %vm1605, %v1542
      %1623 = vst.msk [vmem:[#allocation2 + $0x88] sm:$0xff] %vm1605, %v1544
      %1624 = vst.msk [vmem:[#allocation2 + $0x90] sm:$0xff] %vm1605, %v1546
      %1625 = vst.msk [vmem:[#allocation2 + $0x98] sm:$0xff] %vm1605, %v1548
      %1626 = vst.msk [vmem:[#allocation2 + $0xa0] sm:$0xff] %vm1605, %v1550
      %1627 = vst.msk [vmem:[#allocation2 + $0xa8] sm:$0xff] %vm1605, %v1552
      %1628 = vst.msk [vmem:[#allocation2 + $0xb0] sm:$0xff] %vm1605, %v1554
      %1629 = vst.msk [vmem:[#allocation2 + $0xb8] sm:$0xff] %vm1605, %v1556
      %1630 = vst.msk [vmem:[#allocation2 + $0xc0] sm:$0xff] %vm1605, %v1558
      %1631 = vst.msk [vmem:[#allocation2 + $0xc8] sm:$0xff] %vm1605, %v1560
      %1632 = vst.msk [vmem:[#allocation2 + $0xd0] sm:$0xff] %vm1605, %v1562
      %1633 = vst.msk [vmem:[#allocation2 + $0xd8] sm:$0xff] %vm1605, %v1564
      %1634 = vst.msk [vmem:[#allocation2 + $0xe0] sm:$0xff] %vm1605, %v1566
      %1635 = vst.msk [vmem:[#allocation2 + $0xe8] sm:$0xff] %vm1605, %v1568
      %1636 = vst.msk [vmem:[#allocation2 + $0xf0] sm:$0xff] %vm1605, %v1570
      %1637 = vst.msk [vmem:[#allocation2 + $0xf8] sm:$0xff] %vm1605, %v1572
      %v1638 = vld [vmem:[%s1251 + $0x2] sm:$0xff]
      %v1639 = vld [vmem:[%s1251 + $0xa] sm:$0xff]
      %v1640 = vld [vmem:[%s1251 + $0x1a] sm:$0xff]
      %v1641 = vld [vmem:[%s1251 + $0x22] sm:$0xff]
      %v1642 = vld [vmem:[%s1251 + $0x32] sm:$0xff]
      %v1643 = vld [vmem:[%s1251 + $0x3a] sm:$0xff]
      %v1644 = vld [vmem:[%s1251 + $0x4a] sm:$0xff]
      %v1645 = vld [vmem:[%s1251 + $0x52] sm:$0xff]
      %v1646 = vld [vmem:[%s1251 + $0x62] sm:$0xff]
      %v1647 = vld [vmem:[%s1251 + $0x6a] sm:$0xff]
      %v1648 = vld [vmem:[%s1251 + $0x7a] sm:$0xff]
      %v1649 = vld [vmem:[%s1251 + $0x82] sm:$0xff]
      %v1650 = vld [vmem:[%s1251 + $0x92] sm:$0xff]
      %v1651 = vld [vmem:[%s1251 + $0x9a] sm:$0xff]
      %v1652 = vld [vmem:[%s1251 + $0xaa] sm:$0xff]
      %v1653 = vld [vmem:[%s1251 + $0xb2] sm:$0xff]
      %v1654 = vld [vmem:[%s1251 + $0xc2] sm:$0xff]
      %v1655 = vld [vmem:[%s1251 + $0xca] sm:$0xff]
      %v1656 = vld [vmem:[%s1251 + $0xda] sm:$0xff]
      %v1657 = vld [vmem:[%s1251 + $0xe2] sm:$0xff]
      %v1658 = vld [vmem:[%s1251 + $0xf2] sm:$0xff]
      %v1659 = vld [vmem:[%s1251 + $0xfa] sm:$0xff]
      %v1660 = vld [vmem:[%s1251 + $0x10a] sm:$0xff]
      %v1661 = vld [vmem:[%s1251 + $0x112] sm:$0xff]
      %v1662 = vld [vmem:[%s1251 + $0x122] sm:$0xff]
      %v1663 = vld [vmem:[%s1251 + $0x12a] sm:$0xff]
      %v1664 = vld [vmem:[%s1251 + $0x13a] sm:$0xff]
      %v1665 = vld [vmem:[%s1251 + $0x142] sm:$0xff]
      %v1666 = vld [vmem:[%s1251 + $0x152] sm:$0xff]
      %v1667 = vld [vmem:[%s1251 + $0x15a] sm:$0xff]
      %v1668 = vld [vmem:[%s1251 + $0x16a] sm:$0xff]
      %v1669 = vld [vmem:[%s1251 + $0x172] sm:$0xff]
      %1702 = vrot.lane.b32.xlu0 %v1638, 32
      %v1703 = vpop.permute.xlu0 %1702
      %1704 = vrot.lane.b32.xlu0 %v1639, 32
      %v1705 = vpop.permute.xlu0 %1704
      %1706 = vrot.lane.b32.xlu0 %v1640, 32
      %v1707 = vpop.permute.xlu0 %1706
      %1708 = vrot.lane.b32.xlu0 %v1641, 32
      %v1709 = vpop.permute.xlu0 %1708
      %1710 = vrot.lane.b32.xlu0 %v1642, 32
      %v1711 = vpop.permute.xlu0 %1710
      %1712 = vrot.lane.b32.xlu0 %v1643, 32
      %v1713 = vpop.permute.xlu0 %1712
      %1714 = vrot.lane.b32.xlu0 %v1644, 32
      %v1715 = vpop.permute.xlu0 %1714
      %1716 = vrot.lane.b32.xlu0 %v1645, 32
      %v1717 = vpop.permute.xlu0 %1716
      %1718 = vrot.lane.b32.xlu0 %v1646, 32
      %v1719 = vpop.permute.xlu0 %1718
      %1720 = vrot.lane.b32.xlu0 %v1647, 32
      %v1721 = vpop.permute.xlu0 %1720
      %1722 = vrot.lane.b32.xlu0 %v1648, 32
      %v1723 = vpop.permute.xlu0 %1722
      %1724 = vrot.lane.b32.xlu0 %v1649, 32
      %v1725 = vpop.permute.xlu0 %1724
      %1726 = vrot.lane.b32.xlu0 %v1650, 32
      %v1727 = vpop.permute.xlu0 %1726
      %1728 = vrot.lane.b32.xlu0 %v1651, 32
      %v1729 = vpop.permute.xlu0 %1728
      %1730 = vrot.lane.b32.xlu0 %v1652, 32
      %v1731 = vpop.permute.xlu0 %1730
      %1732 = vrot.lane.b32.xlu0 %v1653, 32
      %v1733 = vpop.permute.xlu0 %1732
      %1734 = vrot.lane.b32.xlu0 %v1654, 32
      %v1735 = vpop.permute.xlu0 %1734
      %1736 = vrot.lane.b32.xlu0 %v1655, 32
      %v1737 = vpop.permute.xlu0 %1736
      %1738 = vrot.lane.b32.xlu0 %v1656, 32
      %v1739 = vpop.permute.xlu0 %1738
      %1740 = vrot.lane.b32.xlu0 %v1657, 32
      %v1741 = vpop.permute.xlu0 %1740
      %1742 = vrot.lane.b32.xlu0 %v1658, 32
      %v1743 = vpop.permute.xlu0 %1742
      %1744 = vrot.lane.b32.xlu0 %v1659, 32
      %v1745 = vpop.permute.xlu0 %1744
      %1746 = vrot.lane.b32.xlu0 %v1660, 32
      %v1747 = vpop.permute.xlu0 %1746
      %1748 = vrot.lane.b32.xlu0 %v1661, 32
      %v1749 = vpop.permute.xlu0 %1748
      %1750 = vrot.lane.b32.xlu0 %v1662, 32
      %v1751 = vpop.permute.xlu0 %1750
      %1752 = vrot.lane.b32.xlu0 %v1663, 32
      %v1753 = vpop.permute.xlu0 %1752
      %1754 = vrot.lane.b32.xlu0 %v1664, 32
      %v1755 = vpop.permute.xlu0 %1754
      %1756 = vrot.lane.b32.xlu0 %v1665, 32
      %v1757 = vpop.permute.xlu0 %1756
      %1758 = vrot.lane.b32.xlu0 %v1666, 32
      %v1759 = vpop.permute.xlu0 %1758
      %1760 = vrot.lane.b32.xlu0 %v1667, 32
      %v1761 = vpop.permute.xlu0 %1760
      %1762 = vrot.lane.b32.xlu0 %v1668, 32
      %v1763 = vpop.permute.xlu0 %1762
      %1764 = vrot.lane.b32.xlu0 %v1669, 32
      %v1765 = vpop.permute.xlu0 %1764
      %vm1798 = vcmask 294144
      %1799 = vst.msk [vmem:[#allocation2] sm:$0xff] %vm1798, %v1703
      %1800 = vst.msk [vmem:[#allocation2 + $0x8] sm:$0xff] %vm1798, %v1705
      %1801 = vst.msk [vmem:[#allocation2 + $0x10] sm:$0xff] %vm1798, %v1707
      %1802 = vst.msk [vmem:[#allocation2 + $0x18] sm:$0xff] %vm1798, %v1709
      %1803 = vst.msk [vmem:[#allocation2 + $0x20] sm:$0xff] %vm1798, %v1711
      %1804 = vst.msk [vmem:[#allocation2 + $0x28] sm:$0xff] %vm1798, %v1713
      %1805 = vst.msk [vmem:[#allocation2 + $0x30] sm:$0xff] %vm1798, %v1715
      %1806 = vst.msk [vmem:[#allocation2 + $0x38] sm:$0xff] %vm1798, %v1717
      %1807 = vst.msk [vmem:[#allocation2 + $0x40] sm:$0xff] %vm1798, %v1719
      %1808 = vst.msk [vmem:[#allocation2 + $0x48] sm:$0xff] %vm1798, %v1721
      %1809 = vst.msk [vmem:[#allocation2 + $0x50] sm:$0xff] %vm1798, %v1723
      %1810 = vst.msk [vmem:[#allocation2 + $0x58] sm:$0xff] %vm1798, %v1725
      %1811 = vst.msk [vmem:[#allocation2 + $0x60] sm:$0xff] %vm1798, %v1727
      %1812 = vst.msk [vmem:[#allocation2 + $0x68] sm:$0xff] %vm1798, %v1729
      %1813 = vst.msk [vmem:[#allocation2 + $0x70] sm:$0xff] %vm1798, %v1731
      %1814 = vst.msk [vmem:[#allocation2 + $0x78] sm:$0xff] %vm1798, %v1733
      %1815 = vst.msk [vmem:[#allocation2 + $0x80] sm:$0xff] %vm1798, %v1735
      %1816 = vst.msk [vmem:[#allocation2 + $0x88] sm:$0xff] %vm1798, %v1737
      %1817 = vst.msk [vmem:[#allocation2 + $0x90] sm:$0xff] %vm1798, %v1739
      %1818 = vst.msk [vmem:[#allocation2 + $0x98] sm:$0xff] %vm1798, %v1741
      %1819 = vst.msk [vmem:[#allocation2 + $0xa0] sm:$0xff] %vm1798, %v1743
      %1820 = vst.msk [vmem:[#allocation2 + $0xa8] sm:$0xff] %vm1798, %v1745
      %1821 = vst.msk [vmem:[#allocation2 + $0xb0] sm:$0xff] %vm1798, %v1747
      %1822 = vst.msk [vmem:[#allocation2 + $0xb8] sm:$0xff] %vm1798, %v1749
      %1823 = vst.msk [vmem:[#allocation2 + $0xc0] sm:$0xff] %vm1798, %v1751
      %1824 = vst.msk [vmem:[#allocation2 + $0xc8] sm:$0xff] %vm1798, %v1753
      %1825 = vst.msk [vmem:[#allocation2 + $0xd0] sm:$0xff] %vm1798, %v1755
      %1826 = vst.msk [vmem:[#allocation2 + $0xd8] sm:$0xff] %vm1798, %v1757
      %1827 = vst.msk [vmem:[#allocation2 + $0xe0] sm:$0xff] %vm1798, %v1759
      %1828 = vst.msk [vmem:[#allocation2 + $0xe8] sm:$0xff] %vm1798, %v1761
      %1829 = vst.msk [vmem:[#allocation2 + $0xf0] sm:$0xff] %vm1798, %v1763
      %1830 = vst.msk [vmem:[#allocation2 + $0xf8] sm:$0xff] %vm1798, %v1765
      %v1831 = vld [vmem:[#allocation2] sm:$0xff]
      %v1832 = vld [vmem:[#allocation2 + $0x8] sm:$0xff]
      %v1833 = vld [vmem:[#allocation2 + $0x10] sm:$0xff]
      %v1834 = vld [vmem:[#allocation2 + $0x18] sm:$0xff]
      %v1835 = vld [vmem:[#allocation2 + $0x20] sm:$0xff]
      %v1836 = vld [vmem:[#allocation2 + $0x28] sm:$0xff]
      %v1837 = vld [vmem:[#allocation2 + $0x30] sm:$0xff]
      %v1838 = vld [vmem:[#allocation2 + $0x38] sm:$0xff]
      %v1839 = vld [vmem:[#allocation2 + $0x40] sm:$0xff]
      %v1840 = vld [vmem:[#allocation2 + $0x48] sm:$0xff]
      %v1841 = vld [vmem:[#allocation2 + $0x50] sm:$0xff]
      %v1842 = vld [vmem:[#allocation2 + $0x58] sm:$0xff]
      %v1843 = vld [vmem:[#allocation2 + $0x60] sm:$0xff]
      %v1844 = vld [vmem:[#allocation2 + $0x68] sm:$0xff]
      %v1845 = vld [vmem:[#allocation2 + $0x70] sm:$0xff]
      %v1846 = vld [vmem:[#allocation2 + $0x78] sm:$0xff]
      %v1847 = vld [vmem:[#allocation2 + $0x80] sm:$0xff]
      %v1848 = vld [vmem:[#allocation2 + $0x88] sm:$0xff]
      %v1849 = vld [vmem:[#allocation2 + $0x90] sm:$0xff]
      %v1850 = vld [vmem:[#allocation2 + $0x98] sm:$0xff]
      %v1851 = vld [vmem:[#allocation2 + $0xa0] sm:$0xff]
      %v1852 = vld [vmem:[#allocation2 + $0xa8] sm:$0xff]
      %v1853 = vld [vmem:[#allocation2 + $0xb0] sm:$0xff]
      %v1854 = vld [vmem:[#allocation2 + $0xb8] sm:$0xff]
      %v1855 = vld [vmem:[#allocation2 + $0xc0] sm:$0xff]
      %v1856 = vld [vmem:[#allocation2 + $0xc8] sm:$0xff]
      %v1857 = vld [vmem:[#allocation2 + $0xd0] sm:$0xff]
      %v1858 = vld [vmem:[#allocation2 + $0xd8] sm:$0xff]
      %v1859 = vld [vmem:[#allocation2 + $0xe0] sm:$0xff]
      %v1860 = vld [vmem:[#allocation2 + $0xe8] sm:$0xff]
      %v1861 = vld [vmem:[#allocation2 + $0xf0] sm:$0xff]
      %v1862 = vld [vmem:[#allocation2 + $0xf8] sm:$0xff]
      %v1863 = vld [vmem:[%s1] sm:$0xff]
      %v1864 = vld [vmem:[%s1 + $0x8] sm:$0xff]
      %v1865 = vld [vmem:[%s1 + $0x10] sm:$0xff]
      %v1866 = vld [vmem:[%s1 + $0x18] sm:$0xff]
      %v1867 = vld [vmem:[%s1 + $0x20] sm:$0xf]
      %vm1868 = vcmask 293888
      %v1870 = vsel %vm1868, %v1831, 0
      %v1873 = vsel %vm1868, %v1832, 0
      %v1876 = vsel %vm1868, %v1833, 0
      %v1879 = vsel %vm1868, %v1834, 0
      %v1882 = vsel %vm1868, %v1835, 0
      %v1885 = vsel %vm1868, %v1836, 0
      %v1888 = vsel %vm1868, %v1837, 0
      %v1891 = vsel %vm1868, %v1838, 0
      %v1894 = vsel %vm1868, %v1839, 0
      %v1897 = vsel %vm1868, %v1840, 0
      %v1900 = vsel %vm1868, %v1841, 0
      %v1903 = vsel %vm1868, %v1842, 0
      %v1906 = vsel %vm1868, %v1843, 0
      %v1909 = vsel %vm1868, %v1844, 0
      %v1912 = vsel %vm1868, %v1845, 0
      %v1915 = vsel %vm1868, %v1846, 0
      %v1918 = vsel %vm1868, %v1847, 0
      %v1921 = vsel %vm1868, %v1848, 0
      %v1924 = vsel %vm1868, %v1849, 0
      %v1927 = vsel %vm1868, %v1850, 0
      %v1930 = vsel %vm1868, %v1851, 0
      %v1933 = vsel %vm1868, %v1852, 0
      %v1936 = vsel %vm1868, %v1853, 0
      %v1939 = vsel %vm1868, %v1854, 0
      %v1942 = vsel %vm1868, %v1855, 0
      %v1945 = vsel %vm1868, %v1856, 0
      %v1948 = vsel %vm1868, %v1857, 0
      %v1951 = vsel %vm1868, %v1858, 0
      %v1954 = vsel %vm1868, %v1859, 0
      %v1957 = vsel %vm1868, %v1860, 0
      %v1960 = vsel %vm1868, %v1861, 0
      %v1963 = vsel %vm1868, %v1862, 0
      %vm1965 = vcmask 1043456
      %v1967 = vsel %vm1965, %v1867, 0
      %1969 = vmatprep.subr.mxu0 0.0
      %1970 = vmatpush1.msra.mxu0 %v1863
      %1971 = vmatprep.subr.mxu0 0.0
      %1972 = vmatpush1.msra.mxu0 %v1864
      %1973 = vmatprep.subr.mxu0 0.0
      %1974 = vmatpush1.msra.mxu0 %v1865
      %1975 = vmatprep.subr.mxu0 0.0
      %1976 = vmatpush1.msra.mxu0 %v1866
      %1977 = vmatprep.subr.mxu0 0.0
      %1978 = vmatpush1.msra.mxu0 %v1967
      %1979 = vmatprep.subr.mxu0 0.0
      %1980 = vmatpush1.msra.mxu0 0.0
      %1981 = vmatprep.subr.mxu0 0.0
      %1982 = vmatpush1.msra.mxu0 0.0
      %1983 = vmatprep.subr.mxu0 0.0
      %1984 = vmatpush1.msra.mxu0 0.0
      %1985 = vmatprep.subr.mxu0 0.0
      %1986 = vmatpush1.msra.mxu0 0.0
      %1987 = vmatprep.subr.mxu0 0.0
      %1988 = vmatpush1.msra.mxu0 0.0
      %1989 = vmatprep.subr.mxu0 0.0
      %1990 = vmatpush1.msra.mxu0 0.0
      %1991 = vmatprep.subr.mxu0 0.0
      %1992 = vmatpush1.msra.mxu0 0.0
      %1993 = vmatprep.subr.mxu0 0.0
      %1994 = vmatpush1.msra.mxu0 0.0
      %1995 = vmatprep.subr.mxu0 0.0
      %1996 = vmatpush1.msra.mxu0 0.0
      %1997 = vmatprep.subr.mxu0 0.0
      %1998 = vmatpush1.msra.mxu0 0.0
      %1999 = vmatprep.subr.mxu0 0.0
      %2000 = vmatpush1.msra.mxu0 0.0
      %2001 = vmatprep.subr.mxu0 0.0
      %2002 = vmatpush1.msra.mxu0 0.0
      %2003 = vmatprep.subr.mxu0 0.0
      %2004 = vmatpush1.msra.mxu0 0.0
      %2005 = vmatprep.subr.mxu0 0.0
      %2006 = vmatpush1.msra.mxu0 0.0
      %2007 = vmatprep.subr.mxu0 0.0
      %2008 = vmatpush1.msra.mxu0 0.0
      %2009 = vmatprep.subr.mxu0 0.0
      %2010 = vmatpush1.msra.mxu0 0.0
      %2011 = vmatprep.subr.mxu0 0.0
      %2012 = vmatpush1.msra.mxu0 0.0
      %2013 = vmatprep.subr.mxu0 0.0
      %2014 = vmatpush1.msra.mxu0 0.0
      %2015 = vmatprep.subr.mxu0 0.0
      %2016 = vmatpush1.msra.mxu0 0.0
      %2017 = vmatprep.subr.mxu0 0.0
      %2018 = vmatpush1.msra.mxu0 0.0
      %2019 = vmatprep.subr.mxu0 0.0
      %2020 = vmatpush1.msra.mxu0 0.0
      %2021 = vmatprep.subr.mxu0 0.0
      %2022 = vmatpush1.msra.mxu0 0.0
      %2023 = vmatprep.subr.mxu0 0.0
      %2024 = vmatpush1.msra.mxu0 0.0
      %2025 = vmatprep.subr.mxu0 0.0
      %2026 = vmatpush1.msra.mxu0 0.0
      %2027 = vmatprep.subr.mxu0 0.0
      %2028 = vmatpush1.msra.mxu0 0.0
      %2029 = vmatprep.subr.mxu0 0.0
      %2030 = vmatpush1.msra.mxu0 0.0
      %2031 = vmatprep.subr.mxu0 0.0
      %2032 = vmatpush1.msra.mxu0 0.0
      %2033 = vmatprep.mubr.f32.mxu0 0.0
      %2034 = vmatmul.mubr.f32.gmra.mrb[0].mxu0 %v1870
      %v2035 = vpop.f32.mrb[0].mxu0
      %v2036 = vadd.f32 0.0, %v2035
      %v2037 = vpop.f32.mrb[0].mxu0
      %2038 = vmatprep.mubr.f32.mxu0 0.0
      %2039 = vmatmul.mubr.f32.gmra.mrb[0].mxu0 %v1873
      %v2040 = vpop.f32.mrb[0].mxu0
      %v2041 = vadd.f32 0.0, %v2040
      %v2042 = vpop.f32.mrb[0].mxu0
      %2043 = vmatprep.mubr.f32.mxu0 0.0
      %2044 = vmatmul.mubr.f32.gmra.mrb[0].mxu0 %v1876
      %v2045 = vpop.f32.mrb[0].mxu0
      %v2046 = vadd.f32 0.0, %v2045
      %v2047 = vpop.f32.mrb[0].mxu0
      %2048 = vmatprep.mubr.f32.mxu0 0.0
      %2049 = vmatmul.mubr.f32.gmra.mrb[0].mxu0 %v1879
      %v2050 = vpop.f32.mrb[0].mxu0
      %v2051 = vadd.f32 0.0, %v2050
      %v2052 = vpop.f32.mrb[0].mxu0
      %2053 = vmatprep.mubr.f32.mxu0 0.0
      %2054 = vmatmul.mubr.f32.gmra.mrb[0].mxu0 %v1882
      %v2055 = vpop.f32.mrb[0].mxu0
      %v2056 = vadd.f32 0.0, %v2055
      %v2057 = vpop.f32.mrb[0].mxu0
      %2058 = vmatprep.mubr.f32.mxu0 0.0
      %2059 = vmatmul.mubr.f32.gmra.mrb[0].mxu0 %v1885
      %v2060 = vpop.f32.mrb[0].mxu0
      %v2061 = vadd.f32 0.0, %v2060
      %v2062 = vpop.f32.mrb[0].mxu0
      %2063 = vmatprep.mubr.f32.mxu0 0.0
      %2064 = vmatmul.mubr.f32.gmra.mrb[0].mxu0 %v1888
      %v2065 = vpop.f32.mrb[0].mxu0
      %v2066 = vadd.f32 0.0, %v2065
      %v2067 = vpop.f32.mrb[0].mxu0
      %2068 = vmatprep.mubr.f32.mxu0 0.0
      %2069 = vmatmul.mubr.f32.gmra.mrb[0].mxu0 %v1891
      %v2070 = vpop.f32.mrb[0].mxu0
      %v2071 = vadd.f32 0.0, %v2070
      %v2072 = vpop.f32.mrb[0].mxu0
      %2073 = vmatprep.mubr.f32.mxu0 0.0
      %2074 = vmatmul.mubr.f32.gmra.mrb[0].mxu0 %v1894
      %v2075 = vpop.f32.mrb[0].mxu0
      %v2076 = vadd.f32 0.0, %v2075
      %v2077 = vpop.f32.mrb[0].mxu0
      %2078 = vmatprep.mubr.f32.mxu0 0.0
      %2079 = vmatmul.mubr.f32.gmra.mrb[0].mxu0 %v1897
      %v2080 = vpop.f32.mrb[0].mxu0
      %v2081 = vadd.f32 0.0, %v2080
      %v2082 = vpop.f32.mrb[0].mxu0
      %2083 = vmatprep.mubr.f32.mxu0 0.0
      %2084 = vmatmul.mubr.f32.gmra.mrb[0].mxu0 %v1900
      %v2085 = vpop.f32.mrb[0].mxu0
      %v2086 = vadd.f32 0.0, %v2085
      %v2087 = vpop.f32.mrb[0].mxu0
      %2088 = vmatprep.mubr.f32.mxu0 0.0
      %2089 = vmatmul.mubr.f32.gmra.mrb[0].mxu0 %v1903
      %v2090 = vpop.f32.mrb[0].mxu0
      %v2091 = vadd.f32 0.0, %v2090
      %v2092 = vpop.f32.mrb[0].mxu0
      %2093 = vmatprep.mubr.f32.mxu0 0.0
      %2094 = vmatmul.mubr.f32.gmra.mrb[0].mxu0 %v1906
      %v2095 = vpop.f32.mrb[0].mxu0
      %v2096 = vadd.f32 0.0, %v2095
      %v2097 = vpop.f32.mrb[0].mxu0
      %2098 = vmatprep.mubr.f32.mxu0 0.0
      %2099 = vmatmul.mubr.f32.gmra.mrb[0].mxu0 %v1909
      %v2100 = vpop.f32.mrb[0].mxu0
      %v2101 = vadd.f32 0.0, %v2100
      %v2102 = vpop.f32.mrb[0].mxu0
      %2103 = vmatprep.mubr.f32.mxu0 0.0
      %2104 = vmatmul.mubr.f32.gmra.mrb[0].mxu0 %v1912
      %v2105 = vpop.f32.mrb[0].mxu0
      %v2106 = vadd.f32 0.0, %v2105
      %v2107 = vpop.f32.mrb[0].mxu0
      %2108 = vmatprep.mubr.f32.mxu0 0.0
      %2109 = vmatmul.mubr.f32.gmra.mrb[0].mxu0 %v1915
      %v2110 = vpop.f32.mrb[0].mxu0
      %v2111 = vadd.f32 0.0, %v2110
      %v2112 = vpop.f32.mrb[0].mxu0
      %2113 = vmatprep.mubr.f32.mxu0 0.0
      %2114 = vmatmul.mubr.f32.gmra.mrb[0].mxu0 %v1918
      %v2115 = vpop.f32.mrb[0].mxu0
      %v2116 = vadd.f32 0.0, %v2115
      %v2117 = vpop.f32.mrb[0].mxu0
      %2118 = vmatprep.mubr.f32.mxu0 0.0
      %2119 = vmatmul.mubr.f32.gmra.mrb[0].mxu0 %v1921
      %v2120 = vpop.f32.mrb[0].mxu0
      %v2121 = vadd.f32 0.0, %v2120
      %v2122 = vpop.f32.mrb[0].mxu0
      %2123 = vmatprep.mubr.f32.mxu0 0.0
      %2124 = vmatmul.mubr.f32.gmra.mrb[0].mxu0 %v1924
      %v2125 = vpop.f32.mrb[0].mxu0
      %v2126 = vadd.f32 0.0, %v2125
      %v2127 = vpop.f32.mrb[0].mxu0
      %2128 = vmatprep.mubr.f32.mxu0 0.0
      %2129 = vmatmul.mubr.f32.gmra.mrb[0].mxu0 %v1927
      %v2130 = vpop.f32.mrb[0].mxu0
      %v2131 = vadd.f32 0.0, %v2130
      %v2132 = vpop.f32.mrb[0].mxu0
      %2133 = vmatprep.mubr.f32.mxu0 0.0
      %2134 = vmatmul.mubr.f32.gmra.mrb[0].mxu0 %v1930
      %v2135 = vpop.f32.mrb[0].mxu0
      %v2136 = vadd.f32 0.0, %v2135
      %v2137 = vpop.f32.mrb[0].mxu0
      %2138 = vmatprep.mubr.f32.mxu0 0.0
      %2139 = vmatmul.mubr.f32.gmra.mrb[0].mxu0 %v1933
      %v2140 = vpop.f32.mrb[0].mxu0
      %v2141 = vadd.f32 0.0, %v2140
      %v2142 = vpop.f32.mrb[0].mxu0
      %2143 = vmatprep.mubr.f32.mxu0 0.0
      %2144 = vmatmul.mubr.f32.gmra.mrb[0].mxu0 %v1936
      %v2145 = vpop.f32.mrb[0].mxu0
      %v2146 = vadd.f32 0.0, %v2145
      %v2147 = vpop.f32.mrb[0].mxu0
      %2148 = vmatprep.mubr.f32.mxu0 0.0
      %2149 = vmatmul.mubr.f32.gmra.mrb[0].mxu0 %v1939
      %v2150 = vpop.f32.mrb[0].mxu0
      %v2151 = vadd.f32 0.0, %v2150
      %v2152 = vpop.f32.mrb[0].mxu0
      %2153 = vmatprep.mubr.f32.mxu0 0.0
      %2154 = vmatmul.mubr.f32.gmra.mrb[0].mxu0 %v1942
      %v2155 = vpop.f32.mrb[0].mxu0
      %v2156 = vadd.f32 0.0, %v2155
      %v2157 = vpop.f32.mrb[0].mxu0
      %2158 = vmatprep.mubr.f32.mxu0 0.0
      %2159 = vmatmul.mubr.f32.gmra.mrb[0].mxu0 %v1945
      %v2160 = vpop.f32.mrb[0].mxu0
      %v2161 = vadd.f32 0.0, %v2160
      %v2162 = vpop.f32.mrb[0].mxu0
      %2163 = vmatprep.mubr.f32.mxu0 0.0
      %2164 = vmatmul.mubr.f32.gmra.mrb[0].mxu0 %v1948
      %v2165 = vpop.f32.mrb[0].mxu0
      %v2166 = vadd.f32 0.0, %v2165
      %v2167 = vpop.f32.mrb[0].mxu0
      %2168 = vmatprep.mubr.f32.mxu0 0.0
      %2169 = vmatmul.mubr.f32.gmra.mrb[0].mxu0 %v1951
      %v2170 = vpop.f32.mrb[0].mxu0
      %v2171 = vadd.f32 0.0, %v2170
      %v2172 = vpop.f32.mrb[0].mxu0
      %2173 = vmatprep.mubr.f32.mxu0 0.0
      %2174 = vmatmul.mubr.f32.gmra.mrb[0].mxu0 %v1954
      %v2175 = vpop.f32.mrb[0].mxu0
      %v2176 = vadd.f32 0.0, %v2175
      %v2177 = vpop.f32.mrb[0].mxu0
      %2178 = vmatprep.mubr.f32.mxu0 0.0
      %2179 = vmatmul.mubr.f32.gmra.mrb[0].mxu0 %v1957
      %v2180 = vpop.f32.mrb[0].mxu0
      %v2181 = vadd.f32 0.0, %v2180
      %v2182 = vpop.f32.mrb[0].mxu0
      %2183 = vmatprep.mubr.f32.mxu0 0.0
      %2184 = vmatmul.mubr.f32.gmra.mrb[0].mxu0 %v1960
      %v2185 = vpop.f32.mrb[0].mxu0
      %v2186 = vadd.f32 0.0, %v2185
      %v2187 = vpop.f32.mrb[0].mxu0
      %2188 = vmatprep.mubr.f32.mxu0 0.0
      %2189 = vmatmul.mubr.f32.gmra.mrb[0].mxu0 %v1963
      %v2190 = vpop.f32.mrb[0].mxu0
      %v2191 = vadd.f32 0.0, %v2190
      %v2192 = vpop.f32.mrb[0].mxu0
      %2193 = vdwg.mxu0
      %2194 = vst [vmem:[%s210] sm:$0xff] %v2036
      %2195 = vst [vmem:[%s210 + $0x8] sm:$0xff] %v2041
      %2196 = vst [vmem:[%s210 + $0x10] sm:$0xff] %v2046
      %2197 = vst [vmem:[%s210 + $0x18] sm:$0xff] %v2051
      %2198 = vst [vmem:[%s210 + $0x20] sm:$0xff] %v2056
      %2199 = vst [vmem:[%s210 + $0x28] sm:$0xff] %v2061
      %2200 = vst [vmem:[%s210 + $0x30] sm:$0xff] %v2066
      %2201 = vst [vmem:[%s210 + $0x38] sm:$0xff] %v2071
      %2202 = vst [vmem:[%s210 + $0x40] sm:$0xff] %v2076
      %2203 = vst [vmem:[%s210 + $0x48] sm:$0xff] %v2081
      %2204 = vst [vmem:[%s210 + $0x50] sm:$0xff] %v2086
      %2205 = vst [vmem:[%s210 + $0x58] sm:$0xff] %v2091
      %2206 = vst [vmem:[%s210 + $0x60] sm:$0xff] %v2096
      %2207 = vst [vmem:[%s210 + $0x68] sm:$0xff] %v2101
      %2208 = vst [vmem:[%s210 + $0x70] sm:$0xff] %v2106
      %2209 = vst [vmem:[%s210 + $0x78] sm:$0xff] %v2111
      %2210 = vst [vmem:[%s210 + $0x80] sm:$0xff] %v2116
      %2211 = vst [vmem:[%s210 + $0x88] sm:$0xff] %v2121
      %2212 = vst [vmem:[%s210 + $0x90] sm:$0xff] %v2126
      %2213 = vst [vmem:[%s210 + $0x98] sm:$0xff] %v2131
      %2214 = vst [vmem:[%s210 + $0xa0] sm:$0xff] %v2136
      %2215 = vst [vmem:[%s210 + $0xa8] sm:$0xff] %v2141
      %2216 = vst [vmem:[%s210 + $0xb0] sm:$0xff] %v2146
      %2217 = vst [vmem:[%s210 + $0xb8] sm:$0xff] %v2151
      %2218 = vst [vmem:[%s210 + $0xc0] sm:$0xff] %v2156
      %2219 = vst [vmem:[%s210 + $0xc8] sm:$0xff] %v2161
      %2220 = vst [vmem:[%s210 + $0xd0] sm:$0xff] %v2166
      %2221 = vst [vmem:[%s210 + $0xd8] sm:$0xff] %v2171
      %2222 = vst [vmem:[%s210 + $0xe0] sm:$0xff] %v2176
      %2223 = vst [vmem:[%s210 + $0xe8] sm:$0xff] %v2181
      %2224 = vst [vmem:[%s210 + $0xf0] sm:$0xff] %v2186
      %2225 = vst [vmem:[%s210 + $0xf8] sm:$0xff] %v2191
      %v2226 = vadd.f32 %v2036, %v2041
      %v2227 = vadd.f32 %v2226, %v2046
      %v2228 = vadd.f32 %v2227, %v2051
      %v2229 = vadd.f32 %v2228, %v2056
      %v2230 = vadd.f32 %v2229, %v2061
      %v2231 = vadd.f32 %v2230, %v2066
      %v2232 = vadd.f32 %v2231, %v2071
      %v2233 = vadd.f32 %v2232, %v2076
      %v2234 = vadd.f32 %v2233, %v2081
      %v2235 = vadd.f32 %v2234, %v2086
      %v2236 = vadd.f32 %v2235, %v2091
      %v2237 = vadd.f32 %v2236, %v2096
      %v2238 = vadd.f32 %v2237, %v2101
      %v2239 = vadd.f32 %v2238, %v2106
      %v2240 = vadd.f32 %v2239, %v2111
      %v2241 = vadd.f32 %v2240, %v2116
      %v2242 = vadd.f32 %v2241, %v2121
      %v2243 = vadd.f32 %v2242, %v2126
      %v2244 = vadd.f32 %v2243, %v2131
      %v2245 = vadd.f32 %v2244, %v2136
      %v2246 = vadd.f32 %v2245, %v2141
      %v2247 = vadd.f32 %v2246, %v2146
      %v2248 = vadd.f32 %v2247, %v2151
      %v2249 = vadd.f32 %v2248, %v2156
      %v2250 = vadd.f32 %v2249, %v2161
      %v2251 = vadd.f32 %v2250, %v2166
      %v2252 = vadd.f32 %v2251, %v2171
      %v2253 = vadd.f32 %v2252, %v2176
      %v2254 = vadd.f32 %v2253, %v2181
      %v2255 = vadd.f32 %v2254, %v2186
      %v2256 = vadd.f32 %v2255, %v2191
      %v2257 = vrot.slane %v2256, 4
      %v2258 = vadd.f32 %v2256, %v2257
      %v2259 = vrot.slane %v2258, 2
      %v2260 = vadd.f32 %v2258, %v2259
      %v2261 = vrot.slane %v2260, 1
      %v2262 = vadd.f32 %v2260, %v2261
      %2263 = vst [vmem:[%s215] sm:$0xff] %v2262
      %v2264 = vmul.f32 %v2036, %v2036
      %v2265 = vmul.f32 %v2041, %v2041
      %v2266 = vmul.f32 %v2046, %v2046
      %v2267 = vmul.f32 %v2051, %v2051
      %v2268 = vmul.f32 %v2056, %v2056
      %v2269 = vmul.f32 %v2061, %v2061
      %v2270 = vmul.f32 %v2066, %v2066
      %v2271 = vmul.f32 %v2071, %v2071
      %v2272 = vmul.f32 %v2076, %v2076
      %v2273 = vmul.f32 %v2081, %v2081
      %v2274 = vmul.f32 %v2086, %v2086
      %v2275 = vmul.f32 %v2091, %v2091
      %v2276 = vmul.f32 %v2096, %v2096
      %v2277 = vmul.f32 %v2101, %v2101
      %v2278 = vmul.f32 %v2106, %v2106
      %v2279 = vmul.f32 %v2111, %v2111
      %v2280 = vmul.f32 %v2116, %v2116
      %v2281 = vmul.f32 %v2121, %v2121
      %v2282 = vmul.f32 %v2126, %v2126
      %v2283 = vmul.f32 %v2131, %v2131
      %v2284 = vmul.f32 %v2136, %v2136
      %v2285 = vmul.f32 %v2141, %v2141
      %v2286 = vmul.f32 %v2146, %v2146
      %v2287 = vmul.f32 %v2151, %v2151
      %v2288 = vmul.f32 %v2156, %v2156
      %v2289 = vmul.f32 %v2161, %v2161
      %v2290 = vmul.f32 %v2166, %v2166
      %v2291 = vmul.f32 %v2171, %v2171
      %v2292 = vmul.f32 %v2176, %v2176
      %v2293 = vmul.f32 %v2181, %v2181
      %v2294 = vmul.f32 %v2186, %v2186
      %v2295 = vmul.f32 %v2191, %v2191
      %v2296 = vadd.f32 %v2264, %v2265
      %v2297 = vadd.f32 %v2296, %v2266
      %v2298 = vadd.f32 %v2297, %v2267
      %v2299 = vadd.f32 %v2298, %v2268
      %v2300 = vadd.f32 %v2299, %v2269
      %v2301 = vadd.f32 %v2300, %v2270
      %v2302 = vadd.f32 %v2301, %v2271
      %v2303 = vadd.f32 %v2302, %v2272
      %v2304 = vadd.f32 %v2303, %v2273
      %v2305 = vadd.f32 %v2304, %v2274
      %v2306 = vadd.f32 %v2305, %v2275
      %v2307 = vadd.f32 %v2306, %v2276
      %v2308 = vadd.f32 %v2307, %v2277
      %v2309 = vadd.f32 %v2308, %v2278
      %v2310 = vadd.f32 %v2309, %v2279
      %v2311 = vadd.f32 %v2310, %v2280
      %v2312 = vadd.f32 %v2311, %v2281
      %v2313 = vadd.f32 %v2312, %v2282
      %v2314 = vadd.f32 %v2313, %v2283
      %v2315 = vadd.f32 %v2314, %v2284
      %v2316 = vadd.f32 %v2315, %v2285
      %v2317 = vadd.f32 %v2316, %v2286
      %v2318 = vadd.f32 %v2317, %v2287
      %v2319 = vadd.f32 %v2318, %v2288
      %v2320 = vadd.f32 %v2319, %v2289
      %v2321 = vadd.f32 %v2320, %v2290
      %v2322 = vadd.f32 %v2321, %v2291
      %v2323 = vadd.f32 %v2322, %v2292
      %v2324 = vadd.f32 %v2323, %v2293
      %v2325 = vadd.f32 %v2324, %v2294
      %v2326 = vadd.f32 %v2325, %v2295
      %v2327 = vrot.slane %v2326, 4
      %v2328 = vadd.f32 %v2326, %v2327
      %v2329 = vrot.slane %v2328, 2
      %v2330 = vadd.f32 %v2328, %v2329
      %v2331 = vrot.slane %v2330, 1
      %v2332 = vadd.f32 %v2330, %v2331
      %2333 = vst [vmem:[%s219] sm:$0xff] %v2332
      %s2334 = smul.u32 32, %s16
      %p2335 = scmp.lt.s32.totalorder %s2334, 63
      %s2336 = scalar_select %p2335, %s2334, 63
      %s2337 = smul.addr %s2336, 8
      %s2338 = scalar_lea.vmem %s2, %s2337
      %p2339 = scmp.lt.s32.totalorder %s16, 1
      %s2340 = scalar_select %p2339, %s16, 1
      %s2341 = smul.addr %s2340, 8
      %s2342 = scalar_lea.vmem %s3, %s2341
      %p2343 = scmp.lt.s32.totalorder %s16, 1
      %s2344 = scalar_select %p2343, %s16, 1
      %s2345 = smul.addr %s2344, 8
      %s2346 = scalar_lea.vmem %s4, %s2345
      // Predicated region
      $region29: #{conv_bn_relu_forward.2} parent=27 // pred_check
        %p2347 = pneg %p81
      $region30: #{conv_bn_relu_forward.2} parent=27 // pred_check_branch
        %2349 = sbr.rel (%p2347) target = $region32
      $region31: #{conv_bn_relu_forward.2} parent=27 // pred_region
        %s2350 = smul.u32 32, %s16
      $region32: #{conv_bn_relu_forward.2} parent=27 // pred_fallthru
        _
      // Predicated region
      $region33: #{conv_bn_relu_forward.2} parent=27 // pred_check
        %p2351 = pneg %p107
      $region34: #{conv_bn_relu_forward.2} parent=27 // pred_check_branch
        %2353 = sbr.rel (%p2351) target = $region36
      $region35: #{conv_bn_relu_forward.2} parent=27 // pred_region
        _
      $region36: #{conv_bn_relu_forward.2} parent=27 // pred_fallthru
        _
      // Predicated region
      $region37: #{conv_bn_relu_forward.2} parent=27 // pred_check
        %p2354 = pneg %p133
      $region38: #{conv_bn_relu_forward.2} parent=27 // pred_check_branch
        %2356 = sbr.rel (%p2354) target = $region40
      $region39: #{conv_bn_relu_forward.2} parent=27 // pred_region
        _
      $region40: #{conv_bn_relu_forward.2} parent=27 // pred_fallthru
        _
    $region28: #{conv_bn_relu_forward.2} parent=5 // pred_fallthru
      _
    %p2357 = scmp.le.s32.totalorder 2, %s11
    // Predicated region
    $region41: #{conv_bn_relu_forward.2} parent=5 // pred_check
      %p2358 = pneg %p2357
    $region42: #{conv_bn_relu_forward.2} parent=5 // pred_check_branch
      %2360 = sbr.rel (%p2358) target = $region44
    $region43: #{conv_bn_relu_forward.2} parent=5 // pred_region
      %s2361 = ssub.s32 %s11, 2
      // Predicated region
      $region45: #{conv_bn_relu_forward.2} parent=43 // pred_check
        %p2362 = pneg %p87
      $region46: #{conv_bn_relu_forward.2} parent=43 // pred_check_branch
        %2364 = sbr.rel (%p2362) target = $region48
      $region47: #{conv_bn_relu_forward.2} parent=43 // pred_region
        %s2365 = smul.u32 32, %s17
        %p2366 = scmp.lt.s32.totalorder %s2365, 63
        %s2367 = scalar_select %p2366, %s2365, 63
        %s2368 = smul.addr %s2367, 8
        %s2369 = scalar_lea.vmem %s2, %s2368
      $region48: #{conv_bn_relu_forward.2} parent=43 // pred_fallthru
        _
      // Predicated region
      $region49: #{conv_bn_relu_forward.2} parent=43 // pred_check
        %p2370 = pneg %p113
      $region50: #{conv_bn_relu_forward.2} parent=43 // pred_check_branch
        %2372 = sbr.rel (%p2370) target = $region52
      $region51: #{conv_bn_relu_forward.2} parent=43 // pred_region
        %p2373 = scmp.lt.s32.totalorder %s17, 1
        %s2374 = scalar_select %p2373, %s17, 1
        %s2375 = smul.addr %s2374, 8
        %s2376 = scalar_lea.vmem %s3, %s2375
      $region52: #{conv_bn_relu_forward.2} parent=43 // pred_fallthru
        _
      // Predicated region
      $region53: #{conv_bn_relu_forward.2} parent=43 // pred_check
        %p2377 = pneg %p139
      $region54: #{conv_bn_relu_forward.2} parent=43 // pred_check_branch
        %2379 = sbr.rel (%p2377) target = $region56
      $region55: #{conv_bn_relu_forward.2} parent=43 // pred_region
        %p2380 = scmp.lt.s32.totalorder %s17, 1
        %s2381 = scalar_select %p2380, %s17, 1
        %s2382 = smul.addr %s2381, 8
        %s2383 = scalar_lea.vmem %s4, %s2382
      $region56: #{conv_bn_relu_forward.2} parent=43 // pred_fallthru
        _
    $region44: #{conv_bn_relu_forward.2} parent=5 // pred_fallthru
      _
  $region6: #{conv_bn_relu_forward.2} parent=0 // loop_footer
    %s15 = sadd.s32 1, %s11
  $region7: #{conv_bn_relu_forward.2} parent=0 // loop_footer_branch
    %10 = sbr.rel target = $region3
  $region8: #{conv_bn_relu_forward.2} parent=0 // loop_exit
    _

</llo_original>
